<compile_context>
chip_gen: v6e
topology: v6e:2x2x1
jax: 0.10.0
libtpu: 0.0.40
codegen_flags: <defaults>
</compile_context>

<pallas_src>
import functools

import jax
import jax.numpy as jnp
from jax.experimental import pallas as pl
from jax.experimental.pallas import tpu as pltpu


_HIDDEN = 1000  # nn.Linear(input_dim, 1000)


def _round_up(n, m):
    return ((n + m - 1) // m) * m


def _mlp_kernel(x_ref, w1t_ref, b1_ref, w2t_ref, b2_ref, o_ref):
    # In-kernel bf16 cast of the activations (VPU) — no wrapper-side astype.
    x = x_ref[...].astype(w1t_ref.dtype)
    # hidden = x @ W1^T + b1  (bf16 operands, f32 MXU accumulate, f32 bias add)
    h = jnp.dot(x, w1t_ref[...], preferred_element_type=jnp.float32)
    h = h + b1_ref[...]
    # out = hidden @ W2^T + b2  (re-feed hidden as bf16 -> MXU-native path)
    o = jnp.dot(h.astype(w2t_ref.dtype), w2t_ref[...],
                preferred_element_type=jnp.float32)
    o_ref[...] = (o + b2_ref[...]).astype(o_ref.dtype)


def prepare_params(w1, b1, w2, b2, param_dtype=jnp.bfloat16):
    """One-time parameter preprocessing (hoisted out of the forward hot path).

    - transposes to (in, out) so the kernel computes x @ W^T like torch.nn.Linear,
    - zero-pads the hidden dim 1000 -> 1024 (multiple of 128) for clean lane layout
      (padding is exact: padded hidden entries are 0 and hit zero rows of W2^T),
    - stores the big matrices in param_dtype (bf16 default; fp8 is an option on
      v7x) to cut the weight HBM->VMEM traffic that dominates this kernel; the
      biases stay f32 since they are added after the f32 accumulation.
    """
    hidden, d_in = w1.shape
    d_out = w2.shape[0]
    hidden_pad = _round_up(hidden, 128)  # 1000 -> 1024

    w1t = jnp.zeros((d_in, hidden_pad), jnp.float32).at[:, :hidden].set(w1.T)
    w2t = jnp.zeros((hidden_pad, d_out), jnp.float32).at[:hidden, :].set(w2.T)
    b1p = jnp.zeros((1, hidden_pad), jnp.float32).at[:, :hidden].set(b1[None, :])
    b2p = b2[None, :].astype(jnp.float32)

    return {
        "w1t": w1t.astype(param_dtype),
        "b1": b1p,
        "w2t": w2t.astype(param_dtype),
        "b2": b2p,
    }


@functools.partial(jax.jit, static_argnames=("output_shape",))
def simple_alignment_forward(x, params, output_shape):
    """x: (B, S, H) with (S, H) == input_shape.  Returns (B, out0, out1)."""
    B = x.shape[0]
    d_in = x.shape[1] * x.shape[2]
    d_out = output_shape[0] * output_shape[1]
    d_hid = params["w1t"].shape[1]

    # nn.Flatten: contiguous reshape (metadata only) — the bf16 cast and any
    # sublane handling happen inside the kernel, not as wrapper XLA ops.
    x_flat = x.reshape(B, d_in)

    # Batch tiling:
    #  * B <= 256: one grid step, block shape == full array dims (legal for any
    #    B, no padding, no slicing; Mosaic masks the short sublane group).
    #  * B  > 256: tile at 256 rows to fill MXU rows; the weight/bias specs
    #    return block (0,0) every step so they DMA once and stay VMEM-resident
    #    while x/out tiles pipeline. Ragged last tile handled by Pallas.
    TILE_B = B if B <= 256 else 256
    grid_b = pl.cdiv(B, TILE_B)

    # Advisory cost hint: tiny FLOPs, ~1 MB of (mostly weight) bytes.
    itemsize_w = params["w1t"].dtype.itemsize
    bytes_accessed = (
        params["w1t"].size * itemsize_w
        + params["w2t"].size * itemsize_w
        + params["b1"].size * 4
        + params["b2"].size * 4
        + B * d_in * 4
        + B * d_out * 4
    )
    flops = 2 * B * d_in * d_hid + 2 * B * d_hid * d_out

    out_flat = pl.pallas_call(
        _mlp_kernel,
        out_shape=jax.ShapeDtypeStruct((B, d_out), jnp.float32),
        grid=(grid_b,),
        in_specs=[
            pl.BlockSpec((TILE_B, d_in), lambda i: (i, 0)),   # x tile
            pl.BlockSpec((d_in, d_hid), lambda i: (0, 0)),    # W1^T (resident)
            pl.BlockSpec((1, d_hid), lambda i: (0, 0)),       # b1   (resident)
            pl.BlockSpec((d_hid, d_out), lambda i: (0, 0)),   # W2^T (resident)
            pl.BlockSpec((1, d_out), lambda i: (0, 0)),       # b2   (resident)
        ],
        out_specs=pl.BlockSpec((TILE_B, d_out), lambda i: (i, 0)),
        compiler_params=pltpu.CompilerParams(
            dimension_semantics=("parallel",)),   # shards batch across TCs on v7x
        cost_estimate=pl.CostEstimate(
            flops=flops, transcendentals=0, bytes_accessed=bytes_accessed),
    )(x_flat, params["w1t"], params["b1"], params["w2t"], params["b2"])

    return out_flat.reshape(B, output_shape[0], output_shape[1])


if __name__ == "__main__":
    # Per-sample input (8, 32), output (8, 32) -> d_in = d_out = 256, hidden = 1000.
    input_shape = (8, 32)
    output_shape = (8, 32)
    batch = 2
    d_in = input_shape[0] * input_shape[1]
    d_out = output_shape[0] * output_shape[1]
    hidden = _HIDDEN

    key = jax.random.PRNGKey(0)
    kx, kw1, kb1, kw2, kb2 = jax.random.split(key, 5)

    x = jax.random.normal(kx, (batch,) + input_shape, dtype=jnp.float32)

    # Parameter init mimicking torch.nn.Linear defaults
    # (uniform(-1/sqrt(fan_in), 1/sqrt(fan_in))).
    bound1 = 1.0 / (d_in ** 0.5)
    w1 = jax.random.uniform(kw1, (hidden, d_in), jnp.float32, -bound1, bound1)
    b1 = jax.random.uniform(kb1, (hidden,), jnp.float32, -bound1, bound1)
    bound2 = 1.0 / (hidden ** 0.5)
    w2 = jax.random.uniform(kw2, (d_out, hidden), jnp.float32, -bound2, bound2)
    b2 = jax.random.uniform(kb2, (d_out,), jnp.float32, -bound2, bound2)

    # One-time parameter preprocessing (NOT in the per-call path).
    params = prepare_params(w1, b1, w2, b2)

    out = simple_alignment_forward(x, params, output_shape)
    out = jax.block_until_ready(out)
    assert out.shape == (batch,) + output_shape, out.shape

    hp = jax.lax.Precision.HIGHEST
    f32 = jnp.float32

    # 1) Tight check against a reference using the same bf16-quantized
    #    weights/activations the kernel consumes (validates the kernel math).
    xq = x.reshape(batch, d_in).astype(jnp.bfloat16).astype(f32)
    w1q = w1.astype(jnp.bfloat16).astype(f32)
    w2q = w2.astype(jnp.bfloat16).astype(f32)
    h_q = jnp.dot(xq, w1q.T, precision=hp) + b1
    h_q = h_q.astype(jnp.bfloat16).astype(f32)
    ref_q = (jnp.dot(h_q, w2q.T, precision=hp) + b2).reshape(batch, *output_shape)
    err_q = float(jnp.max(jnp.abs(out - ref_q)))
    assert jnp.allclose(out, ref_q, atol=5e-3, rtol=5e-3), err_q

    # 2) Looser check against the exact f32 module math (bf16 weight storage
    #    introduces a small, deliberate quantization error).
    ref = jnp.dot(x.reshape(batch, d_in), w1.T, precision=hp) + b1
    ref = (jnp.dot(ref, w2.T, precision=hp) + b2).reshape(batch, *output_shape)
    err = float(jnp.max(jnp.abs(out - ref)))
    assert jnp.allclose(out, ref, atol=2e-2, rtol=2e-2), err

    print("KERNEL_OK")
</pallas_src>

<mosaic_0001>
module attributes {stable_mosaic.version = 11 : i64} {
  func.func @_mlp_kernel(%arg0: i32, %arg1: memref<2x256xf32, #tpu.memory_space<vmem>>, %arg2: memref<256x1024xbf16, #tpu.memory_space<vmem>>, %arg3: memref<1x1024xf32, #tpu.memory_space<vmem>>, %arg4: memref<1024x256xbf16, #tpu.memory_space<vmem>>, %arg5: memref<1x256xf32, #tpu.memory_space<vmem>>, %arg6: memref<2x256xf32, #tpu.memory_space<vmem>>) attributes {dimension_semantics = [#tpu.dimension_semantics<parallel>], iteration_bounds = array<i64: 1>, scalar_prefetch = 0 : i64, scratch_operands = 0 : i64, tpu.core_type = #tpu.core_type<tc>, window_params = [{transform_indices = @transform_0, window_bounds = array<i64: 2, 256>}, {pipeline_mode = #tpu.pipeline_mode<synchronous>, transform_indices = @transform_1, window_bounds = array<i64: 256, 1024>}, {pipeline_mode = #tpu.pipeline_mode<synchronous>, transform_indices = @transform_2, window_bounds = array<i64: 1, 1024>}, {pipeline_mode = #tpu.pipeline_mode<synchronous>, transform_indices = @transform_3, window_bounds = array<i64: 1024, 256>}, {pipeline_mode = #tpu.pipeline_mode<synchronous>, transform_indices = @transform_4, window_bounds = array<i64: 1, 256>}, {transform_indices = @transform_5, window_bounds = array<i64: 2, 256>}]} {
    %c0 = arith.constant 0 : index
    %c0_0 = arith.constant 0 : index
    %0 = vector.load %arg1[%c0, %c0_0] : memref<2x256xf32, #tpu.memory_space<vmem>>, vector<2x256xf32>
    %1 = arith.truncf %0 : vector<2x256xf32> to vector<2x256xbf16>
    %c0_1 = arith.constant 0 : index
    %c0_2 = arith.constant 0 : index
    %2 = vector.load %arg2[%c0_1, %c0_2] : memref<256x1024xbf16, #tpu.memory_space<vmem>>, vector<256x1024xbf16>
    %cst = arith.constant dense<0.000000e+00> : vector<2x1024xf32>
    %3 = tpu.matmul %1, %2, %cst {dimension_numbers = #tpu.dot_dimension_numbers<[1], [0], [0], [1], [0, 0, 1, 1], [], []>} : vector<2x256xbf16>, vector<256x1024xbf16>, vector<2x1024xf32> -> vector<2x1024xf32>
    %c0_3 = arith.constant 0 : index
    %c0_4 = arith.constant 0 : index
    %4 = vector.load %arg3[%c0_3, %c0_4] : memref<1x1024xf32, #tpu.memory_space<vmem>>, vector<1x1024xf32>
    %5 = vector.broadcast %4 : vector<1x1024xf32> to vector<2x1024xf32>
    %6 = arith.addf %3, %5 : vector<2x1024xf32>
    %7 = arith.truncf %6 : vector<2x1024xf32> to vector<2x1024xbf16>
    %c0_5 = arith.constant 0 : index
    %c0_6 = arith.constant 0 : index
    %8 = vector.load %arg4[%c0_5, %c0_6] : memref<1024x256xbf16, #tpu.memory_space<vmem>>, vector<1024x256xbf16>
    %cst_7 = arith.constant dense<0.000000e+00> : vector<2x256xf32>
    %9 = tpu.matmul %7, %8, %cst_7 {dimension_numbers = #tpu.dot_dimension_numbers<[1], [0], [0], [1], [0, 0, 1, 1], [], []>} : vector<2x1024xbf16>, vector<1024x256xbf16>, vector<2x256xf32> -> vector<2x256xf32>
    %c0_8 = arith.constant 0 : index
    %c0_9 = arith.constant 0 : index
    %10 = vector.load %arg5[%c0_8, %c0_9] : memref<1x256xf32, #tpu.memory_space<vmem>>, vector<1x256xf32>
    %11 = vector.broadcast %10 : vector<1x256xf32> to vector<2x256xf32>
    %12 = arith.addf %9, %11 : vector<2x256xf32>
    %c0_10 = arith.constant 0 : index
    %c0_11 = arith.constant 0 : index
    %13 = vector.load %arg6[%c0_10, %c0_11] : memref<2x256xf32, #tpu.memory_space<vmem>>, vector<2x256xf32>
    tpu.vector_store %arg6[%c0_10, %c0_11], %12 {strides = array<i32>} : memref<2x256xf32, #tpu.memory_space<vmem>>, vector<2x256xf32>,
    return
  }
  func.func @transform_0(%arg0: i32) -> (i32, i32) {
    %c0_i32 = arith.constant 0 : i32
    %c0_i32_0 = arith.constant 0 : i32
    return %arg0, %c0_i32 : i32, i32
  }
  func.func @transform_1(%arg0: i32) -> (i32, i32) {
    %c0_i32 = arith.constant 0 : i32
    %c0_i32_0 = arith.constant 0 : i32
    %c0_i32_1 = arith.constant 0 : i32
    return %c0_i32, %c0_i32_0 : i32, i32
  }
  func.func @transform_2(%arg0: i32) -> (i32, i32) {
    %c0_i32 = arith.constant 0 : i32
    %c0_i32_0 = arith.constant 0 : i32
    %c0_i32_1 = arith.constant 0 : i32
    return %c0_i32, %c0_i32_0 : i32, i32
  }
  func.func @transform_3(%arg0: i32) -> (i32, i32) {
    %c0_i32 = arith.constant 0 : i32
    %c0_i32_0 = arith.constant 0 : i32
    %c0_i32_1 = arith.constant 0 : i32
    return %c0_i32, %c0_i32_0 : i32, i32
  }
  func.func @transform_4(%arg0: i32) -> (i32, i32) {
    %c0_i32 = arith.constant 0 : i32
    %c0_i32_0 = arith.constant 0 : i32
    %c0_i32_1 = arith.constant 0 : i32
    return %c0_i32, %c0_i32_0 : i32, i32
  }
  func.func @transform_5(%arg0: i32) -> (i32, i32) {
    %c0_i32 = arith.constant 0 : i32
    %c0_i32_0 = arith.constant 0 : i32
    return %arg0, %c0_i32 : i32, i32
  }
}

</mosaic_0001>

<llo_original>
// kernel: simple_alignment_forward.1
$region0: #{simple_alignment_forward.1}
  #allocation0 [shape = 'u32[]', space=smem, size = 0x4, offset = 0x4, fixed_abs, tag = 'smem constant byte address 0x4 - core index']
  #allocation1 [shape = 'u32[144,128]{1,0:T(1,128)}', space=vmem, size = 0x12000, scoped, tag = 'internal scratch']
  %s0 = inlined_call_operand.vmem [shape: f32[2,256], index: 0, kind: input, shape index: {}]
  %s1 = inlined_call_operand.hbm [shape: bf16[256,1024], index: 1, kind: input, shape index: {}]
  %s2 = inlined_call_operand.vmem [shape: f32[1,1024], index: 2, kind: input, shape index: {}]
  %s3 = inlined_call_operand.hbm [shape: bf16[1024,256], index: 3, kind: input, shape index: {}]
  %s4 = inlined_call_operand.vmem [shape: f32[1,256], index: 4, kind: input, shape index: {}]
  %s5 = inlined_call_operand.vmem [shape: f32[2,256], index: 5, kind: output, shape index: {}]
  %s6 = sld [smem:[#allocation0]]
  $region38: #{simple_alignment_forward.1} parent=0
    _
  %s8 = ssub.s32 1, %s6
  %s9 = scalar_select 0, %s8, %s6
  $region1: #{simple_alignment_forward.1} parent=0
    #allocation2 [shape = 'u8[524288]{0}', space=vmem, size = 0x80000, scoped, tag = 'input window, operand 1, single buffered']
    #allocation3 [shape = 's32[1]{0}', space=sflag, size = 0x4, scoped, tag = 'scoped memory for simple_alignment_forward.1']
    #allocation4 [shape = 'u8[524288]{0}', space=vmem, size = 0x80000, scoped, tag = 'input window, operand 3, single buffered']
    #allocation5 [shape = 's32[1]{0}', space=sflag, size = 0x4, scoped, tag = 'scoped memory for simple_alignment_forward.1']
    %10 = vsyncpa [#allocation3], 0
    %11 = vsyncpa [#allocation5], 0
    // Predicated region
    $region2: #{simple_alignment_forward.1} parent=1 // pred_check
      _
    $region3: #{simple_alignment_forward.1} parent=1 // pred_check_branch
      %13 = sbr.rel (0) target = $region5
    $region4: #{simple_alignment_forward.1} parent=1 // pred_region
      _
    $region5: #{simple_alignment_forward.1} parent=1 // pred_fallthru
      _
    // Predicated region
    $region6: #{simple_alignment_forward.1} parent=1 // pred_check
      _
    $region7: #{simple_alignment_forward.1} parent=1 // pred_check_branch
      %15 = sbr.rel (0) target = $region9
    $region8: #{simple_alignment_forward.1} parent=1 // pred_region
      %s17 = ssub.s32 16384, 16384
      %18 = vsyncadd [#allocation3], %s17
      %s19 = sshll.u32 [#allocation2], 4
      %s20 = int_to_ptr.vmem [resolvable:$true] %s19
      %25 = dma.hbm_to_vmem [thread:$0]  %s1, 16384, %s20, [#allocation3], 512, 512, 32
    $region9: #{simple_alignment_forward.1} parent=1 // pred_fallthru
      _
    // Predicated region
    $region10: #{simple_alignment_forward.1} parent=1 // pred_check
      _
    $region11: #{simple_alignment_forward.1} parent=1 // pred_check_branch
      %27 = sbr.rel (0) target = $region13
    $region12: #{simple_alignment_forward.1} parent=1 // pred_region
      _
    $region13: #{simple_alignment_forward.1} parent=1 // pred_fallthru
      _
    // Predicated region
    $region14: #{simple_alignment_forward.1} parent=1 // pred_check
      _
    $region15: #{simple_alignment_forward.1} parent=1 // pred_check_branch
      %29 = sbr.rel (0) target = $region17
    $region16: #{simple_alignment_forward.1} parent=1 // pred_region
      %s31 = ssub.s32 16384, 16384
      %32 = vsyncadd [#allocation5], %s31
      %s33 = sshll.u32 [#allocation4], 4
      %s34 = int_to_ptr.vmem [resolvable:$true] %s33
      %39 = dma.hbm_to_vmem [thread:$0]  %s3, 16384, %s34, [#allocation5], 128, 128, 8
    $region17: #{simple_alignment_forward.1} parent=1 // pred_fallthru
      _
    // Predicated region
    $region18: #{simple_alignment_forward.1} parent=1 // pred_check
      _
    $region19: #{simple_alignment_forward.1} parent=1 // pred_check_branch
      %41 = sbr.rel (0) target = $region21
    $region20: #{simple_alignment_forward.1} parent=1 // pred_region
      _
    $region21: #{simple_alignment_forward.1} parent=1 // pred_fallthru
      _
    // Predicated region
    $region22: #{simple_alignment_forward.1} parent=1 // pred_check
      _
    $region23: #{simple_alignment_forward.1} parent=1 // pred_check_branch
      %43 = sbr.rel (0) target = $region25
    $region24: #{simple_alignment_forward.1} parent=1 // pred_region
      %44 = dma.done [#allocation3], 16384
    $region25: #{simple_alignment_forward.1} parent=1 // pred_fallthru
      _
    // Predicated region
    $region26: #{simple_alignment_forward.1} parent=1 // pred_check
      _
    $region27: #{simple_alignment_forward.1} parent=1 // pred_check_branch
      %46 = sbr.rel (0) target = $region29
    $region28: #{simple_alignment_forward.1} parent=1 // pred_region
      %47 = dma.done [#allocation5], 16384
    $region29: #{simple_alignment_forward.1} parent=1 // pred_fallthru
      _
    %v48 = vld [vmem:[%s0] sm:$0xf]
    %v51 = vunpack.c.l.s4 1983009808
    %v52 = vunpack.c.0.s8 %v51
    %v53 = vlaneseq
    %v54 = vshrl.u32 %v53, 7
    %v55 = vsub.s32 %v52, %v54
    %v56 = vrot.slane %v48, %v55
    %v57 = vcombine.high %v56, %v56
    %v60 = vpack.c.bf16 %v56, %v56
    %v61 = vpack.c.bf16 %v57, %v57
    %v62 = vld [vmem:[#allocation2] sm:$0xff]
    %v63 = vld [vmem:[#allocation2 + $0x8] sm:$0xff]
    %v64 = vld [vmem:[#allocation2 + $0x10] sm:$0xff]
    %v65 = vld [vmem:[#allocation2 + $0x18] sm:$0xff]
    %v66 = vld [vmem:[#allocation2 + $0x20] sm:$0xff]
    %v67 = vld [vmem:[#allocation2 + $0x28] sm:$0xff]
    %v68 = vld [vmem:[#allocation2 + $0x30] sm:$0xff]
    %v69 = vld [vmem:[#allocation2 + $0x38] sm:$0xff]
    %v70 = vld [vmem:[#allocation2 + $0x40] sm:$0xff]
    %v71 = vld [vmem:[#allocation2 + $0x48] sm:$0xff]
    %v72 = vld [vmem:[#allocation2 + $0x50] sm:$0xff]
    %v73 = vld [vmem:[#allocation2 + $0x58] sm:$0xff]
    %v74 = vld [vmem:[#allocation2 + $0x60] sm:$0xff]
    %v75 = vld [vmem:[#allocation2 + $0x68] sm:$0xff]
    %v76 = vld [vmem:[#allocation2 + $0x70] sm:$0xff]
    %v77 = vld [vmem:[#allocation2 + $0x78] sm:$0xff]
    %v78 = vld [vmem:[#allocation2 + $0x80] sm:$0xff]
    %v79 = vld [vmem:[#allocation2 + $0x88] sm:$0xff]
    %v80 = vld [vmem:[#allocation2 + $0x90] sm:$0xff]
    %v81 = vld [vmem:[#allocation2 + $0x98] sm:$0xff]
    %v82 = vld [vmem:[#allocation2 + $0xa0] sm:$0xff]
    %v83 = vld [vmem:[#allocation2 + $0xa8] sm:$0xff]
    %v84 = vld [vmem:[#allocation2 + $0xb0] sm:$0xff]
    %v85 = vld [vmem:[#allocation2 + $0xb8] sm:$0xff]
    %v86 = vld [vmem:[#allocation2 + $0xc0] sm:$0xff]
    %v87 = vld [vmem:[#allocation2 + $0xc8] sm:$0xff]
    %v88 = vld [vmem:[#allocation2 + $0xd0] sm:$0xff]
    %v89 = vld [vmem:[#allocation2 + $0xd8] sm:$0xff]
    %v90 = vld [vmem:[#allocation2 + $0xe0] sm:$0xff]
    %v91 = vld [vmem:[#allocation2 + $0xe8] sm:$0xff]
    %v92 = vld [vmem:[#allocation2 + $0xf0] sm:$0xff]
    %v93 = vld [vmem:[#allocation2 + $0xf8] sm:$0xff]
    %v94 = vld [vmem:[#allocation2 + $0x100] sm:$0xff]
    %v95 = vld [vmem:[#allocation2 + $0x108] sm:$0xff]
    %v96 = vld [vmem:[#allocation2 + $0x110] sm:$0xff]
    %v97 = vld [vmem:[#allocation2 + $0x118] sm:$0xff]
    %v98 = vld [vmem:[#allocation2 + $0x120] sm:$0xff]
    %v99 = vld [vmem:[#allocation2 + $0x128] sm:$0xff]
    %v100 = vld [vmem:[#allocation2 + $0x130] sm:$0xff]
    %v101 = vld [vmem:[#allocation2 + $0x138] sm:$0xff]
    %v102 = vld [vmem:[#allocation2 + $0x140] sm:$0xff]
    %v103 = vld [vmem:[#allocation2 + $0x148] sm:$0xff]
    %v104 = vld [vmem:[#allocation2 + $0x150] sm:$0xff]
    %v105 = vld [vmem:[#allocation2 + $0x158] sm:$0xff]
    %v106 = vld [vmem:[#allocation2 + $0x160] sm:$0xff]
    %v107 = vld [vmem:[#allocation2 + $0x168] sm:$0xff]
    %v108 = vld [vmem:[#allocation2 + $0x170] sm:$0xff]
    %v109 = vld [vmem:[#allocation2 + $0x178] sm:$0xff]
    %v110 = vld [vmem:[#allocation2 + $0x180] sm:$0xff]
    %v111 = vld [vmem:[#allocation2 + $0x188] sm:$0xff]
    %v112 = vld [vmem:[#allocation2 + $0x190] sm:$0xff]
    %v113 = vld [vmem:[#allocation2 + $0x198] sm:$0xff]
    %v114 = vld [vmem:[#allocation2 + $0x1a0] sm:$0xff]
    %v115 = vld [vmem:[#allocation2 + $0x1a8] sm:$0xff]
    %v116 = vld [vmem:[#allocation2 + $0x1b0] sm:$0xff]
    %v117 = vld [vmem:[#allocation2 + $0x1b8] sm:$0xff]
    %v118 = vld [vmem:[#allocation2 + $0x1c0] sm:$0xff]
    %v119 = vld [vmem:[#allocation2 + $0x1c8] sm:$0xff]
    %v120 = vld [vmem:[#allocation2 + $0x1d0] sm:$0xff]
    %v121 = vld [vmem:[#allocation2 + $0x1d8] sm:$0xff]
    %v122 = vld [vmem:[#allocation2 + $0x1e0] sm:$0xff]
    %v123 = vld [vmem:[#allocation2 + $0x1e8] sm:$0xff]
    %v124 = vld [vmem:[#allocation2 + $0x1f0] sm:$0xff]
    %v125 = vld [vmem:[#allocation2 + $0x1f8] sm:$0xff]
    %v126 = vld [vmem:[#allocation2 + $0x200] sm:$0xff]
    %v127 = vld [vmem:[#allocation2 + $0x208] sm:$0xff]
    %v128 = vld [vmem:[#allocation2 + $0x210] sm:$0xff]
    %v129 = vld [vmem:[#allocation2 + $0x218] sm:$0xff]
    %v130 = vld [vmem:[#allocation2 + $0x220] sm:$0xff]
    %v131 = vld [vmem:[#allocation2 + $0x228] sm:$0xff]
    %v132 = vld [vmem:[#allocation2 + $0x230] sm:$0xff]
    %v133 = vld [vmem:[#allocation2 + $0x238] sm:$0xff]
    %v134 = vld [vmem:[#allocation2 + $0x240] sm:$0xff]
    %v135 = vld [vmem:[#allocation2 + $0x248] sm:$0xff]
    %v136 = vld [vmem:[#allocation2 + $0x250] sm:$0xff]
    %v137 = vld [vmem:[#allocation2 + $0x258] sm:$0xff]
    %v138 = vld [vmem:[#allocation2 + $0x260] sm:$0xff]
    %v139 = vld [vmem:[#allocation2 + $0x268] sm:$0xff]
    %v140 = vld [vmem:[#allocation2 + $0x270] sm:$0xff]
    %v141 = vld [vmem:[#allocation2 + $0x278] sm:$0xff]
    %v142 = vld [vmem:[#allocation2 + $0x280] sm:$0xff]
    %v143 = vld [vmem:[#allocation2 + $0x288] sm:$0xff]
    %v144 = vld [vmem:[#allocation2 + $0x290] sm:$0xff]
    %v145 = vld [vmem:[#allocation2 + $0x298] sm:$0xff]
    %v146 = vld [vmem:[#allocation2 + $0x2a0] sm:$0xff]
    %v147 = vld [vmem:[#allocation2 + $0x2a8] sm:$0xff]
    %v148 = vld [vmem:[#allocation2 + $0x2b0] sm:$0xff]
    %v149 = vld [vmem:[#allocation2 + $0x2b8] sm:$0xff]
    %v150 = vld [vmem:[#allocation2 + $0x2c0] sm:$0xff]
    %v151 = vld [vmem:[#allocation2 + $0x2c8] sm:$0xff]
    %v152 = vld [vmem:[#allocation2 + $0x2d0] sm:$0xff]
    %v153 = vld [vmem:[#allocation2 + $0x2d8] sm:$0xff]
    %v154 = vld [vmem:[#allocation2 + $0x2e0] sm:$0xff]
    %v155 = vld [vmem:[#allocation2 + $0x2e8] sm:$0xff]
    %v156 = vld [vmem:[#allocation2 + $0x2f0] sm:$0xff]
    %v157 = vld [vmem:[#allocation2 + $0x2f8] sm:$0xff]
    %v158 = vld [vmem:[#allocation2 + $0x300] sm:$0xff]
    %v159 = vld [vmem:[#allocation2 + $0x308] sm:$0xff]
    %v160 = vld [vmem:[#allocation2 + $0x310] sm:$0xff]
    %v161 = vld [vmem:[#allocation2 + $0x318] sm:$0xff]
    %v162 = vld [vmem:[#allocation2 + $0x320] sm:$0xff]
    %v163 = vld [vmem:[#allocation2 + $0x328] sm:$0xff]
    %v164 = vld [vmem:[#allocation2 + $0x330] sm:$0xff]
    %v165 = vld [vmem:[#allocation2 + $0x338] sm:$0xff]
    %v166 = vld [vmem:[#allocation2 + $0x340] sm:$0xff]
    %v167 = vld [vmem:[#allocation2 + $0x348] sm:$0xff]
    %v168 = vld [vmem:[#allocation2 + $0x350] sm:$0xff]
    %v169 = vld [vmem:[#allocation2 + $0x358] sm:$0xff]
    %v170 = vld [vmem:[#allocation2 + $0x360] sm:$0xff]
    %v171 = vld [vmem:[#allocation2 + $0x368] sm:$0xff]
    %v172 = vld [vmem:[#allocation2 + $0x370] sm:$0xff]
    %v173 = vld [vmem:[#allocation2 + $0x378] sm:$0xff]
    %v174 = vld [vmem:[#allocation2 + $0x380] sm:$0xff]
    %v175 = vld [vmem:[#allocation2 + $0x388] sm:$0xff]
    %v176 = vld [vmem:[#allocation2 + $0x390] sm:$0xff]
    %v177 = vld [vmem:[#allocation2 + $0x398] sm:$0xff]
    %v178 = vld [vmem:[#allocation2 + $0x3a0] sm:$0xff]
    %v179 = vld [vmem:[#allocation2 + $0x3a8] sm:$0xff]
    %v180 = vld [vmem:[#allocation2 + $0x3b0] sm:$0xff]
    %v181 = vld [vmem:[#allocation2 + $0x3b8] sm:$0xff]
    %v182 = vld [vmem:[#allocation2 + $0x3c0] sm:$0xff]
    %v183 = vld [vmem:[#allocation2 + $0x3c8] sm:$0xff]
    %v184 = vld [vmem:[#allocation2 + $0x3d0] sm:$0xff]
    %v185 = vld [vmem:[#allocation2 + $0x3d8] sm:$0xff]
    %v186 = vld [vmem:[#allocation2 + $0x3e0] sm:$0xff]
    %v187 = vld [vmem:[#allocation2 + $0x3e8] sm:$0xff]
    %v188 = vld [vmem:[#allocation2 + $0x3f0] sm:$0xff]
    %v189 = vld [vmem:[#allocation2 + $0x3f8] sm:$0xff]
    %v190 = vld [vmem:[%s2] sm:$0xff]
    %v192 = vlaneseq
    %v193 = vshrl.u32 %v192, 7
    %v194 = vsub.s32 0, %v193
    %v195 = vrot.slane %v190, %v194
    %v196 = vlaneseq
    %v197 = vshrl.u32 %v196, 7
    %v198 = vsub.s32 1, %v197
    %v199 = vrot.slane %v190, %v198
    %v200 = vlaneseq
    %v201 = vshrl.u32 %v200, 7
    %v202 = vsub.s32 2, %v201
    %v203 = vrot.slane %v190, %v202
    %v204 = vlaneseq
    %v205 = vshrl.u32 %v204, 7
    %v206 = vsub.s32 3, %v205
    %v207 = vrot.slane %v190, %v206
    %v208 = vlaneseq
    %v209 = vshrl.u32 %v208, 7
    %v210 = vsub.s32 4, %v209
    %v211 = vrot.slane %v190, %v210
    %v212 = vlaneseq
    %v213 = vshrl.u32 %v212, 7
    %v214 = vsub.s32 5, %v213
    %v215 = vrot.slane %v190, %v214
    %v216 = vlaneseq
    %v217 = vshrl.u32 %v216, 7
    %v218 = vsub.s32 6, %v217
    %v219 = vrot.slane %v190, %v218
    %v220 = vlaneseq
    %v221 = vshrl.u32 %v220, 7
    %v222 = vsub.s32 7, %v221
    %v223 = vrot.slane %v190, %v222
    %v360 = vunpack.c.l.b16 %v62
    %v361 = vunpack.c.h.b16 %v62
    %v362 = vunpack.c.l.b16 %v63
    %v363 = vunpack.c.h.b16 %v63
    %v364 = vunpack.c.l.b16 %v64
    %v365 = vunpack.c.h.b16 %v64
    %v366 = vunpack.c.l.b16 %v65
    %v367 = vunpack.c.h.b16 %v65
    %v368 = vunpack.c.l.b16 %v66
    %v369 = vunpack.c.h.b16 %v66
    %v370 = vunpack.c.l.b16 %v67
    %v371 = vunpack.c.h.b16 %v67
    %v372 = vunpack.c.l.b16 %v68
    %v373 = vunpack.c.h.b16 %v68
    %v374 = vunpack.c.l.b16 %v69
    %v375 = vunpack.c.h.b16 %v69
    %v376 = vunpack.c.l.b16 %v70
    %v377 = vunpack.c.h.b16 %v70
    %v378 = vunpack.c.l.b16 %v71
    %v379 = vunpack.c.h.b16 %v71
    %v380 = vunpack.c.l.b16 %v72
    %v381 = vunpack.c.h.b16 %v72
    %v382 = vunpack.c.l.b16 %v73
    %v383 = vunpack.c.h.b16 %v73
    %v384 = vunpack.c.l.b16 %v74
    %v385 = vunpack.c.h.b16 %v74
    %v386 = vunpack.c.l.b16 %v75
    %v387 = vunpack.c.h.b16 %v75
    %v388 = vunpack.c.l.b16 %v76
    %v389 = vunpack.c.h.b16 %v76
    %v390 = vunpack.c.l.b16 %v77
    %v391 = vunpack.c.h.b16 %v77
    %v392 = vunpack.c.l.b16 %v78
    %v393 = vunpack.c.h.b16 %v78
    %v394 = vunpack.c.l.b16 %v79
    %v395 = vunpack.c.h.b16 %v79
    %v396 = vunpack.c.l.b16 %v80
    %v397 = vunpack.c.h.b16 %v80
    %v398 = vunpack.c.l.b16 %v81
    %v399 = vunpack.c.h.b16 %v81
    %v400 = vunpack.c.l.b16 %v82
    %v401 = vunpack.c.h.b16 %v82
    %v402 = vunpack.c.l.b16 %v83
    %v403 = vunpack.c.h.b16 %v83
    %v404 = vunpack.c.l.b16 %v84
    %v405 = vunpack.c.h.b16 %v84
    %v406 = vunpack.c.l.b16 %v85
    %v407 = vunpack.c.h.b16 %v85
    %v408 = vunpack.c.l.b16 %v86
    %v409 = vunpack.c.h.b16 %v86
    %v410 = vunpack.c.l.b16 %v87
    %v411 = vunpack.c.h.b16 %v87
    %v412 = vunpack.c.l.b16 %v88
    %v413 = vunpack.c.h.b16 %v88
    %v414 = vunpack.c.l.b16 %v89
    %v415 = vunpack.c.h.b16 %v89
    %v416 = vunpack.c.l.b16 %v90
    %v417 = vunpack.c.h.b16 %v90
    %v418 = vunpack.c.l.b16 %v91
    %v419 = vunpack.c.h.b16 %v91
    %v420 = vunpack.c.l.b16 %v92
    %v421 = vunpack.c.h.b16 %v92
    %v422 = vunpack.c.l.b16 %v93
    %v423 = vunpack.c.h.b16 %v93
    %v424 = vunpack.c.l.b16 %v94
    %v425 = vunpack.c.h.b16 %v94
    %v426 = vunpack.c.l.b16 %v95
    %v427 = vunpack.c.h.b16 %v95
    %v428 = vunpack.c.l.b16 %v96
    %v429 = vunpack.c.h.b16 %v96
    %v430 = vunpack.c.l.b16 %v97
    %v431 = vunpack.c.h.b16 %v97
    %v432 = vunpack.c.l.b16 %v98
    %v433 = vunpack.c.h.b16 %v98
    %v434 = vunpack.c.l.b16 %v99
    %v435 = vunpack.c.h.b16 %v99
    %v436 = vunpack.c.l.b16 %v100
    %v437 = vunpack.c.h.b16 %v100
    %v438 = vunpack.c.l.b16 %v101
    %v439 = vunpack.c.h.b16 %v101
    %v440 = vunpack.c.l.b16 %v102
    %v441 = vunpack.c.h.b16 %v102
    %v442 = vunpack.c.l.b16 %v103
    %v443 = vunpack.c.h.b16 %v103
    %v444 = vunpack.c.l.b16 %v104
    %v445 = vunpack.c.h.b16 %v104
    %v446 = vunpack.c.l.b16 %v105
    %v447 = vunpack.c.h.b16 %v105
    %v448 = vunpack.c.l.b16 %v106
    %v449 = vunpack.c.h.b16 %v106
    %v450 = vunpack.c.l.b16 %v107
    %v451 = vunpack.c.h.b16 %v107
    %v452 = vunpack.c.l.b16 %v108
    %v453 = vunpack.c.h.b16 %v108
    %v454 = vunpack.c.l.b16 %v109
    %v455 = vunpack.c.h.b16 %v109
    %v456 = vunpack.c.l.b16 %v110
    %v457 = vunpack.c.h.b16 %v110
    %v458 = vunpack.c.l.b16 %v111
    %v459 = vunpack.c.h.b16 %v111
    %v460 = vunpack.c.l.b16 %v112
    %v461 = vunpack.c.h.b16 %v112
    %v462 = vunpack.c.l.b16 %v113
    %v463 = vunpack.c.h.b16 %v113
    %v464 = vunpack.c.l.b16 %v114
    %v465 = vunpack.c.h.b16 %v114
    %v466 = vunpack.c.l.b16 %v115
    %v467 = vunpack.c.h.b16 %v115
    %v468 = vunpack.c.l.b16 %v116
    %v469 = vunpack.c.h.b16 %v116
    %v470 = vunpack.c.l.b16 %v117
    %v471 = vunpack.c.h.b16 %v117
    %v472 = vunpack.c.l.b16 %v118
    %v473 = vunpack.c.h.b16 %v118
    %v474 = vunpack.c.l.b16 %v119
    %v475 = vunpack.c.h.b16 %v119
    %v476 = vunpack.c.l.b16 %v120
    %v477 = vunpack.c.h.b16 %v120
    %v478 = vunpack.c.l.b16 %v121
    %v479 = vunpack.c.h.b16 %v121
    %v480 = vunpack.c.l.b16 %v122
    %v481 = vunpack.c.h.b16 %v122
    %v482 = vunpack.c.l.b16 %v123
    %v483 = vunpack.c.h.b16 %v123
    %v484 = vunpack.c.l.b16 %v124
    %v485 = vunpack.c.h.b16 %v124
    %v486 = vunpack.c.l.b16 %v125
    %v487 = vunpack.c.h.b16 %v125
    %v488 = vunpack.c.l.b16 %v126
    %v489 = vunpack.c.h.b16 %v126
    %v490 = vunpack.c.l.b16 %v127
    %v491 = vunpack.c.h.b16 %v127
    %v492 = vunpack.c.l.b16 %v128
    %v493 = vunpack.c.h.b16 %v128
    %v494 = vunpack.c.l.b16 %v129
    %v495 = vunpack.c.h.b16 %v129
    %v496 = vunpack.c.l.b16 %v130
    %v497 = vunpack.c.h.b16 %v130
    %v498 = vunpack.c.l.b16 %v131
    %v499 = vunpack.c.h.b16 %v131
    %v500 = vunpack.c.l.b16 %v132
    %v501 = vunpack.c.h.b16 %v132
    %v502 = vunpack.c.l.b16 %v133
    %v503 = vunpack.c.h.b16 %v133
    %v504 = vunpack.c.l.b16 %v134
    %v505 = vunpack.c.h.b16 %v134
    %v506 = vunpack.c.l.b16 %v135
    %v507 = vunpack.c.h.b16 %v135
    %v508 = vunpack.c.l.b16 %v136
    %v509 = vunpack.c.h.b16 %v136
    %v510 = vunpack.c.l.b16 %v137
    %v511 = vunpack.c.h.b16 %v137
    %v512 = vunpack.c.l.b16 %v138
    %v513 = vunpack.c.h.b16 %v138
    %v514 = vunpack.c.l.b16 %v139
    %v515 = vunpack.c.h.b16 %v139
    %v516 = vunpack.c.l.b16 %v140
    %v517 = vunpack.c.h.b16 %v140
    %v518 = vunpack.c.l.b16 %v141
    %v519 = vunpack.c.h.b16 %v141
    %v520 = vunpack.c.l.b16 %v142
    %v521 = vunpack.c.h.b16 %v142
    %v522 = vunpack.c.l.b16 %v143
    %v523 = vunpack.c.h.b16 %v143
    %v524 = vunpack.c.l.b16 %v144
    %v525 = vunpack.c.h.b16 %v144
    %v526 = vunpack.c.l.b16 %v145
    %v527 = vunpack.c.h.b16 %v145
    %v528 = vunpack.c.l.b16 %v146
    %v529 = vunpack.c.h.b16 %v146
    %v530 = vunpack.c.l.b16 %v147
    %v531 = vunpack.c.h.b16 %v147
    %v532 = vunpack.c.l.b16 %v148
    %v533 = vunpack.c.h.b16 %v148
    %v534 = vunpack.c.l.b16 %v149
    %v535 = vunpack.c.h.b16 %v149
    %v536 = vunpack.c.l.b16 %v150
    %v537 = vunpack.c.h.b16 %v150
    %v538 = vunpack.c.l.b16 %v151
    %v539 = vunpack.c.h.b16 %v151
    %v540 = vunpack.c.l.b16 %v152
    %v541 = vunpack.c.h.b16 %v152
    %v542 = vunpack.c.l.b16 %v153
    %v543 = vunpack.c.h.b16 %v153
    %v544 = vunpack.c.l.b16 %v154
    %v545 = vunpack.c.h.b16 %v154
    %v546 = vunpack.c.l.b16 %v155
    %v547 = vunpack.c.h.b16 %v155
    %v548 = vunpack.c.l.b16 %v156
    %v549 = vunpack.c.h.b16 %v156
    %v550 = vunpack.c.l.b16 %v157
    %v551 = vunpack.c.h.b16 %v157
    %v552 = vunpack.c.l.b16 %v158
    %v553 = vunpack.c.h.b16 %v158
    %v554 = vunpack.c.l.b16 %v159
    %v555 = vunpack.c.h.b16 %v159
    %v556 = vunpack.c.l.b16 %v160
    %v557 = vunpack.c.h.b16 %v160
    %v558 = vunpack.c.l.b16 %v161
    %v559 = vunpack.c.h.b16 %v161
    %v560 = vunpack.c.l.b16 %v162
    %v561 = vunpack.c.h.b16 %v162
    %v562 = vunpack.c.l.b16 %v163
    %v563 = vunpack.c.h.b16 %v163
    %v564 = vunpack.c.l.b16 %v164
    %v565 = vunpack.c.h.b16 %v164
    %v566 = vunpack.c.l.b16 %v165
    %v567 = vunpack.c.h.b16 %v165
    %v568 = vunpack.c.l.b16 %v166
    %v569 = vunpack.c.h.b16 %v166
    %v570 = vunpack.c.l.b16 %v167
    %v571 = vunpack.c.h.b16 %v167
    %v572 = vunpack.c.l.b16 %v168
    %v573 = vunpack.c.h.b16 %v168
    %v574 = vunpack.c.l.b16 %v169
    %v575 = vunpack.c.h.b16 %v169
    %v576 = vunpack.c.l.b16 %v170
    %v577 = vunpack.c.h.b16 %v170
    %v578 = vunpack.c.l.b16 %v171
    %v579 = vunpack.c.h.b16 %v171
    %v580 = vunpack.c.l.b16 %v172
    %v581 = vunpack.c.h.b16 %v172
    %v582 = vunpack.c.l.b16 %v173
    %v583 = vunpack.c.h.b16 %v173
    %v584 = vunpack.c.l.b16 %v174
    %v585 = vunpack.c.h.b16 %v174
    %v586 = vunpack.c.l.b16 %v175
    %v587 = vunpack.c.h.b16 %v175
    %v588 = vunpack.c.l.b16 %v176
    %v589 = vunpack.c.h.b16 %v176
    %v590 = vunpack.c.l.b16 %v177
    %v591 = vunpack.c.h.b16 %v177
    %v592 = vunpack.c.l.b16 %v178
    %v593 = vunpack.c.h.b16 %v178
    %v594 = vunpack.c.l.b16 %v179
    %v595 = vunpack.c.h.b16 %v179
    %v596 = vunpack.c.l.b16 %v180
    %v597 = vunpack.c.h.b16 %v180
    %v598 = vunpack.c.l.b16 %v181
    %v599 = vunpack.c.h.b16 %v181
    %v600 = vunpack.c.l.b16 %v182
    %v601 = vunpack.c.h.b16 %v182
    %v602 = vunpack.c.l.b16 %v183
    %v603 = vunpack.c.h.b16 %v183
    %v604 = vunpack.c.l.b16 %v184
    %v605 = vunpack.c.h.b16 %v184
    %v606 = vunpack.c.l.b16 %v185
    %v607 = vunpack.c.h.b16 %v185
    %v608 = vunpack.c.l.b16 %v186
    %v609 = vunpack.c.h.b16 %v186
    %v610 = vunpack.c.l.b16 %v187
    %v611 = vunpack.c.h.b16 %v187
    %v612 = vunpack.c.l.b16 %v188
    %v613 = vunpack.c.h.b16 %v188
    %v614 = vunpack.c.l.b16 %v189
    %v615 = vunpack.c.h.b16 %v189
    %v616 = vpack.c.b16 %v368, %v360
    %v617 = vpack.c.b16 %v369, %v361
    %v618 = vpack.c.b16 %v370, %v362
    %v619 = vpack.c.b16 %v371, %v363
    %v620 = vpack.c.b16 %v372, %v364
    %v621 = vpack.c.b16 %v373, %v365
    %v622 = vpack.c.b16 %v374, %v366
    %v623 = vpack.c.b16 %v375, %v367
    %v624 = vpack.c.b16 %v384, %v376
    %v625 = vpack.c.b16 %v385, %v377
    %v626 = vpack.c.b16 %v386, %v378
    %v627 = vpack.c.b16 %v387, %v379
    %v628 = vpack.c.b16 %v388, %v380
    %v629 = vpack.c.b16 %v389, %v381
    %v630 = vpack.c.b16 %v390, %v382
    %v631 = vpack.c.b16 %v391, %v383
    %v632 = vpack.c.b16 %v400, %v392
    %v633 = vpack.c.b16 %v401, %v393
    %v634 = vpack.c.b16 %v402, %v394
    %v635 = vpack.c.b16 %v403, %v395
    %v636 = vpack.c.b16 %v404, %v396
    %v637 = vpack.c.b16 %v405, %v397
    %v638 = vpack.c.b16 %v406, %v398
    %v639 = vpack.c.b16 %v407, %v399
    %v640 = vpack.c.b16 %v416, %v408
    %v641 = vpack.c.b16 %v417, %v409
    %v642 = vpack.c.b16 %v418, %v410
    %v643 = vpack.c.b16 %v419, %v411
    %v644 = vpack.c.b16 %v420, %v412
    %v645 = vpack.c.b16 %v421, %v413
    %v646 = vpack.c.b16 %v422, %v414
    %v647 = vpack.c.b16 %v423, %v415
    %v648 = vpack.c.b16 %v432, %v424
    %v649 = vpack.c.b16 %v433, %v425
    %v650 = vpack.c.b16 %v434, %v426
    %v651 = vpack.c.b16 %v435, %v427
    %v652 = vpack.c.b16 %v436, %v428
    %v653 = vpack.c.b16 %v437, %v429
    %v654 = vpack.c.b16 %v438, %v430
    %v655 = vpack.c.b16 %v439, %v431
    %v656 = vpack.c.b16 %v448, %v440
    %v657 = vpack.c.b16 %v449, %v441
    %v658 = vpack.c.b16 %v450, %v442
    %v659 = vpack.c.b16 %v451, %v443
    %v660 = vpack.c.b16 %v452, %v444
    %v661 = vpack.c.b16 %v453, %v445
    %v662 = vpack.c.b16 %v454, %v446
    %v663 = vpack.c.b16 %v455, %v447
    %v664 = vpack.c.b16 %v464, %v456
    %v665 = vpack.c.b16 %v465, %v457
    %v666 = vpack.c.b16 %v466, %v458
    %v667 = vpack.c.b16 %v467, %v459
    %v668 = vpack.c.b16 %v468, %v460
    %v669 = vpack.c.b16 %v469, %v461
    %v670 = vpack.c.b16 %v470, %v462
    %v671 = vpack.c.b16 %v471, %v463
    %v672 = vpack.c.b16 %v480, %v472
    %v673 = vpack.c.b16 %v481, %v473
    %v674 = vpack.c.b16 %v482, %v474
    %v675 = vpack.c.b16 %v483, %v475
    %v676 = vpack.c.b16 %v484, %v476
    %v677 = vpack.c.b16 %v485, %v477
    %v678 = vpack.c.b16 %v486, %v478
    %v679 = vpack.c.b16 %v487, %v479
    %v680 = vpack.c.b16 %v496, %v488
    %v681 = vpack.c.b16 %v497, %v489
    %v682 = vpack.c.b16 %v498, %v490
    %v683 = vpack.c.b16 %v499, %v491
    %v684 = vpack.c.b16 %v500, %v492
    %v685 = vpack.c.b16 %v501, %v493
    %v686 = vpack.c.b16 %v502, %v494
    %v687 = vpack.c.b16 %v503, %v495
    %v688 = vpack.c.b16 %v512, %v504
    %v689 = vpack.c.b16 %v513, %v505
    %v690 = vpack.c.b16 %v514, %v506
    %v691 = vpack.c.b16 %v515, %v507
    %v692 = vpack.c.b16 %v516, %v508
    %v693 = vpack.c.b16 %v517, %v509
    %v694 = vpack.c.b16 %v518, %v510
    %v695 = vpack.c.b16 %v519, %v511
    %v696 = vpack.c.b16 %v528, %v520
    %v697 = vpack.c.b16 %v529, %v521
    %v698 = vpack.c.b16 %v530, %v522
    %v699 = vpack.c.b16 %v531, %v523
    %v700 = vpack.c.b16 %v532, %v524
    %v701 = vpack.c.b16 %v533, %v525
    %v702 = vpack.c.b16 %v534, %v526
    %v703 = vpack.c.b16 %v535, %v527
    %v704 = vpack.c.b16 %v544, %v536
    %v705 = vpack.c.b16 %v545, %v537
    %v706 = vpack.c.b16 %v546, %v538
    %v707 = vpack.c.b16 %v547, %v539
    %v708 = vpack.c.b16 %v548, %v540
    %v709 = vpack.c.b16 %v549, %v541
    %v710 = vpack.c.b16 %v550, %v542
    %v711 = vpack.c.b16 %v551, %v543
    %v712 = vpack.c.b16 %v560, %v552
    %v713 = vpack.c.b16 %v561, %v553
    %v714 = vpack.c.b16 %v562, %v554
    %v715 = vpack.c.b16 %v563, %v555
    %v716 = vpack.c.b16 %v564, %v556
    %v717 = vpack.c.b16 %v565, %v557
    %v718 = vpack.c.b16 %v566, %v558
    %v719 = vpack.c.b16 %v567, %v559
    %v720 = vpack.c.b16 %v576, %v568
    %v721 = vpack.c.b16 %v577, %v569
    %v722 = vpack.c.b16 %v578, %v570
    %v723 = vpack.c.b16 %v579, %v571
    %v724 = vpack.c.b16 %v580, %v572
    %v725 = vpack.c.b16 %v581, %v573
    %v726 = vpack.c.b16 %v582, %v574
    %v727 = vpack.c.b16 %v583, %v575
    %v728 = vpack.c.b16 %v592, %v584
    %v729 = vpack.c.b16 %v593, %v585
    %v730 = vpack.c.b16 %v594, %v586
    %v731 = vpack.c.b16 %v595, %v587
    %v732 = vpack.c.b16 %v596, %v588
    %v733 = vpack.c.b16 %v597, %v589
    %v734 = vpack.c.b16 %v598, %v590
    %v735 = vpack.c.b16 %v599, %v591
    %v736 = vpack.c.b16 %v608, %v600
    %v737 = vpack.c.b16 %v609, %v601
    %v738 = vpack.c.b16 %v610, %v602
    %v739 = vpack.c.b16 %v611, %v603
    %v740 = vpack.c.b16 %v612, %v604
    %v741 = vpack.c.b16 %v613, %v605
    %v742 = vpack.c.b16 %v614, %v606
    %v743 = vpack.c.b16 %v615, %v607
    %872 = vmatprep.subr.bf16.mxu0 %v673
    %873 = vmatpush1.bf16.msra.mxu0 %v672
    %874 = vmatprep.subr.bf16.mxu0 %v665
    %875 = vmatpush1.bf16.msra.mxu0 %v664
    %876 = vmatprep.subr.bf16.mxu0 %v657
    %877 = vmatpush1.bf16.msra.mxu0 %v656
    %878 = vmatprep.subr.bf16.mxu0 %v649
    %879 = vmatpush1.bf16.msra.mxu0 %v648
    %880 = vmatprep.subr.bf16.mxu0 %v641
    %881 = vmatpush1.bf16.msra.mxu0 %v640
    %882 = vmatprep.subr.bf16.mxu0 %v633
    %883 = vmatpush1.bf16.msra.mxu0 %v632
    %884 = vmatprep.subr.bf16.mxu0 %v625
    %885 = vmatpush1.bf16.msra.mxu0 %v624
    %886 = vmatprep.subr.bf16.mxu0 %v617
    %887 = vmatpush1.bf16.msra.mxu0 %v616
    %888 = vmatprep.subr.bf16.mxu0 %v737
    %889 = vmatpush2.bf16.msra.mxu0 %v736
    %890 = vmatprep.subr.bf16.mxu0 %v729
    %891 = vmatpush2.bf16.msra.mxu0 %v728
    %892 = vmatprep.subr.bf16.mxu0 %v721
    %893 = vmatpush2.bf16.msra.mxu0 %v720
    %894 = vmatprep.subr.bf16.mxu0 %v713
    %895 = vmatpush2.bf16.msra.mxu0 %v712
    %896 = vmatprep.subr.bf16.mxu0 %v705
    %897 = vmatpush2.bf16.msra.mxu0 %v704
    %898 = vmatprep.subr.bf16.mxu0 %v697
    %899 = vmatpush2.bf16.msra.mxu0 %v696
    %900 = vmatprep.subr.bf16.mxu0 %v689
    %901 = vmatpush2.bf16.msra.mxu0 %v688
    %902 = vmatprep.subr.bf16.mxu0 %v681
    %903 = vmatpush2.bf16.msra.mxu0 %v680
    %904 = vmatprep.mubr.bf16.mxu0 %v61
    %905 = vmatmul.mubr.bf16.gmra.mxu0 %v60
    %v906 = vpop.f32.mrf.mxu0
    %v907 = vadd.f32 %v195, %v906
    %v908 = vpop.f32.mrf.mxu0
    %v909 = vadd.f32 %v199, %v908
    %v910 = vpop.f32.mrf.mxu0
    %v911 = vpop.f32.mrf.mxu0
    %912 = vdwg.mxu0
    %913 = vmatprep.subr.bf16.mxu0 %v675
    %914 = vmatpush1.bf16.msra.mxu0 %v674
    %915 = vmatprep.subr.bf16.mxu0 %v667
    %916 = vmatpush1.bf16.msra.mxu0 %v666
    %917 = vmatprep.subr.bf16.mxu0 %v659
    %918 = vmatpush1.bf16.msra.mxu0 %v658
    %919 = vmatprep.subr.bf16.mxu0 %v651
    %920 = vmatpush1.bf16.msra.mxu0 %v650
    %921 = vmatprep.subr.bf16.mxu0 %v643
    %922 = vmatpush1.bf16.msra.mxu0 %v642
    %923 = vmatprep.subr.bf16.mxu0 %v635
    %924 = vmatpush1.bf16.msra.mxu0 %v634
    %925 = vmatprep.subr.bf16.mxu0 %v627
    %926 = vmatpush1.bf16.msra.mxu0 %v626
    %927 = vmatprep.subr.bf16.mxu0 %v619
    %928 = vmatpush1.bf16.msra.mxu0 %v618
    %929 = vmatprep.subr.bf16.mxu0 %v739
    %930 = vmatpush2.bf16.msra.mxu0 %v738
    %931 = vmatprep.subr.bf16.mxu0 %v731
    %932 = vmatpush2.bf16.msra.mxu0 %v730
    %933 = vmatprep.subr.bf16.mxu0 %v723
    %934 = vmatpush2.bf16.msra.mxu0 %v722
    %935 = vmatprep.subr.bf16.mxu0 %v715
    %936 = vmatpush2.bf16.msra.mxu0 %v714
    %937 = vmatprep.subr.bf16.mxu0 %v707
    %938 = vmatpush2.bf16.msra.mxu0 %v706
    %939 = vmatprep.subr.bf16.mxu0 %v699
    %940 = vmatpush2.bf16.msra.mxu0 %v698
    %941 = vmatprep.subr.bf16.mxu0 %v691
    %942 = vmatpush2.bf16.msra.mxu0 %v690
    %943 = vmatprep.subr.bf16.mxu0 %v683
    %944 = vmatpush2.bf16.msra.mxu0 %v682
    %945 = vmatprep.mubr.bf16.mxu0 %v61
    %946 = vmatmul.mubr.bf16.gmra.mxu0 %v60
    %v947 = vpop.f32.mrf.mxu0
    %v948 = vadd.f32 %v203, %v947
    %v949 = vpop.f32.mrf.mxu0
    %v950 = vadd.f32 %v207, %v949
    %v951 = vpop.f32.mrf.mxu0
    %v952 = vpop.f32.mrf.mxu0
    %953 = vdwg.mxu0
    %954 = vmatprep.subr.bf16.mxu0 %v677
    %955 = vmatpush1.bf16.msra.mxu0 %v676
    %956 = vmatprep.subr.bf16.mxu0 %v669
    %957 = vmatpush1.bf16.msra.mxu0 %v668
    %958 = vmatprep.subr.bf16.mxu0 %v661
    %959 = vmatpush1.bf16.msra.mxu0 %v660
    %960 = vmatprep.subr.bf16.mxu0 %v653
    %961 = vmatpush1.bf16.msra.mxu0 %v652
    %962 = vmatprep.subr.bf16.mxu0 %v645
    %963 = vmatpush1.bf16.msra.mxu0 %v644
    %964 = vmatprep.subr.bf16.mxu0 %v637
    %965 = vmatpush1.bf16.msra.mxu0 %v636
    %966 = vmatprep.subr.bf16.mxu0 %v629
    %967 = vmatpush1.bf16.msra.mxu0 %v628
    %968 = vmatprep.subr.bf16.mxu0 %v621
    %969 = vmatpush1.bf16.msra.mxu0 %v620
    %970 = vmatprep.subr.bf16.mxu0 %v741
    %971 = vmatpush2.bf16.msra.mxu0 %v740
    %972 = vmatprep.subr.bf16.mxu0 %v733
    %973 = vmatpush2.bf16.msra.mxu0 %v732
    %974 = vmatprep.subr.bf16.mxu0 %v725
    %975 = vmatpush2.bf16.msra.mxu0 %v724
    %976 = vmatprep.subr.bf16.mxu0 %v717
    %977 = vmatpush2.bf16.msra.mxu0 %v716
    %978 = vmatprep.subr.bf16.mxu0 %v709
    %979 = vmatpush2.bf16.msra.mxu0 %v708
    %980 = vmatprep.subr.bf16.mxu0 %v701
    %981 = vmatpush2.bf16.msra.mxu0 %v700
    %982 = vmatprep.subr.bf16.mxu0 %v693
    %983 = vmatpush2.bf16.msra.mxu0 %v692
    %984 = vmatprep.subr.bf16.mxu0 %v685
    %985 = vmatpush2.bf16.msra.mxu0 %v684
    %986 = vmatprep.mubr.bf16.mxu0 %v61
    %987 = vmatmul.mubr.bf16.gmra.mxu0 %v60
    %v988 = vpop.f32.mrf.mxu0
    %v989 = vadd.f32 %v211, %v988
    %v990 = vpop.f32.mrf.mxu0
    %v991 = vadd.f32 %v215, %v990
    %v992 = vpop.f32.mrf.mxu0
    %v993 = vpop.f32.mrf.mxu0
    %994 = vdwg.mxu0
    %995 = vmatprep.subr.bf16.mxu0 %v679
    %996 = vmatpush1.bf16.msra.mxu0 %v678
    %997 = vmatprep.subr.bf16.mxu0 %v671
    %998 = vmatpush1.bf16.msra.mxu0 %v670
    %999 = vmatprep.subr.bf16.mxu0 %v663
    %1000 = vmatpush1.bf16.msra.mxu0 %v662
    %1001 = vmatprep.subr.bf16.mxu0 %v655
    %1002 = vmatpush1.bf16.msra.mxu0 %v654
    %1003 = vmatprep.subr.bf16.mxu0 %v647
    %1004 = vmatpush1.bf16.msra.mxu0 %v646
    %1005 = vmatprep.subr.bf16.mxu0 %v639
    %1006 = vmatpush1.bf16.msra.mxu0 %v638
    %1007 = vmatprep.subr.bf16.mxu0 %v631
    %1008 = vmatpush1.bf16.msra.mxu0 %v630
    %1009 = vmatprep.subr.bf16.mxu0 %v623
    %1010 = vmatpush1.bf16.msra.mxu0 %v622
    %1011 = vmatprep.subr.bf16.mxu0 %v743
    %1012 = vmatpush2.bf16.msra.mxu0 %v742
    %1013 = vmatprep.subr.bf16.mxu0 %v735
    %1014 = vmatpush2.bf16.msra.mxu0 %v734
    %1015 = vmatprep.subr.bf16.mxu0 %v727
    %1016 = vmatpush2.bf16.msra.mxu0 %v726
    %1017 = vmatprep.subr.bf16.mxu0 %v719
    %1018 = vmatpush2.bf16.msra.mxu0 %v718
    %1019 = vmatprep.subr.bf16.mxu0 %v711
    %1020 = vmatpush2.bf16.msra.mxu0 %v710
    %1021 = vmatprep.subr.bf16.mxu0 %v703
    %1022 = vmatpush2.bf16.msra.mxu0 %v702
    %1023 = vmatprep.subr.bf16.mxu0 %v695
    %1024 = vmatpush2.bf16.msra.mxu0 %v694
    %1025 = vmatprep.subr.bf16.mxu0 %v687
    %1026 = vmatpush2.bf16.msra.mxu0 %v686
    %1027 = vmatprep.mubr.bf16.mxu0 %v61
    %1028 = vmatmul.mubr.bf16.gmra.mxu0 %v60
    %v1029 = vpop.f32.mrf.mxu0
    %v1030 = vadd.f32 %v219, %v1029
    %v1031 = vpop.f32.mrf.mxu0
    %v1032 = vadd.f32 %v223, %v1031
    %v1033 = vpop.f32.mrf.mxu0
    %v1034 = vpop.f32.mrf.mxu0
    %1035 = vdwg.mxu0
    %v1036 = vpack.c.bf16 %v907, %v907
    %v1037 = vpack.c.bf16 %v909, %v909
    %v1038 = vpack.c.bf16 %v948, %v948
    %v1039 = vpack.c.bf16 %v950, %v950
    %v1040 = vpack.c.bf16 %v989, %v989
    %v1041 = vpack.c.bf16 %v991, %v991
    %v1042 = vpack.c.bf16 %v1030, %v1030
    %v1043 = vpack.c.bf16 %v1032, %v1032
    %v1044 = vld [vmem:[#allocation4] sm:$0xff]
    %v1045 = vld [vmem:[#allocation4 + $0x8] sm:$0xff]
    %v1046 = vld [vmem:[#allocation4 + $0x10] sm:$0xff]
    %v1047 = vld [vmem:[#allocation4 + $0x18] sm:$0xff]
    %v1048 = vld [vmem:[#allocation4 + $0x20] sm:$0xff]
    %v1049 = vld [vmem:[#allocation4 + $0x28] sm:$0xff]
    %v1050 = vld [vmem:[#allocation4 + $0x30] sm:$0xff]
    %v1051 = vld [vmem:[#allocation4 + $0x38] sm:$0xff]
    %v1052 = vld [vmem:[#allocation4 + $0x40] sm:$0xff]
    %v1053 = vld [vmem:[#allocation4 + $0x48] sm:$0xff]
    %v1054 = vld [vmem:[#allocation4 + $0x50] sm:$0xff]
    %v1055 = vld [vmem:[#allocation4 + $0x58] sm:$0xff]
    %v1056 = vld [vmem:[#allocation4 + $0x60] sm:$0xff]
    %v1057 = vld [vmem:[#allocation4 + $0x68] sm:$0xff]
    %v1058 = vld [vmem:[#allocation4 + $0x70] sm:$0xff]
    %v1059 = vld [vmem:[#allocation4 + $0x78] sm:$0xff]
    %v1060 = vld [vmem:[#allocation4 + $0x80] sm:$0xff]
    %v1061 = vld [vmem:[#allocation4 + $0x88] sm:$0xff]
    %v1062 = vld [vmem:[#allocation4 + $0x90] sm:$0xff]
    %v1063 = vld [vmem:[#allocation4 + $0x98] sm:$0xff]
    %v1064 = vld [vmem:[#allocation4 + $0xa0] sm:$0xff]
    %v1065 = vld [vmem:[#allocation4 + $0xa8] sm:$0xff]
    %v1066 = vld [vmem:[#allocation4 + $0xb0] sm:$0xff]
    %v1067 = vld [vmem:[#allocation4 + $0xb8] sm:$0xff]
    %v1068 = vld [vmem:[#allocation4 + $0xc0] sm:$0xff]
    %v1069 = vld [vmem:[#allocation4 + $0xc8] sm:$0xff]
    %v1070 = vld [vmem:[#allocation4 + $0xd0] sm:$0xff]
    %v1071 = vld [vmem:[#allocation4 + $0xd8] sm:$0xff]
    %v1072 = vld [vmem:[#allocation4 + $0xe0] sm:$0xff]
    %v1073 = vld [vmem:[#allocation4 + $0xe8] sm:$0xff]
    %v1074 = vld [vmem:[#allocation4 + $0xf0] sm:$0xff]
    %v1075 = vld [vmem:[#allocation4 + $0xf8] sm:$0xff]
    %v1076 = vld [vmem:[#allocation4 + $0x100] sm:$0xff]
    %v1077 = vld [vmem:[#allocation4 + $0x108] sm:$0xff]
    %v1078 = vld [vmem:[#allocation4 + $0x110] sm:$0xff]
    %v1079 = vld [vmem:[#allocation4 + $0x118] sm:$0xff]
    %v1080 = vld [vmem:[#allocation4 + $0x120] sm:$0xff]
    %v1081 = vld [vmem:[#allocation4 + $0x128] sm:$0xff]
    %v1082 = vld [vmem:[#allocation4 + $0x130] sm:$0xff]
    %v1083 = vld [vmem:[#allocation4 + $0x138] sm:$0xff]
    %v1084 = vld [vmem:[#allocation4 + $0x140] sm:$0xff]
    %v1085 = vld [vmem:[#allocation4 + $0x148] sm:$0xff]
    %v1086 = vld [vmem:[#allocation4 + $0x150] sm:$0xff]
    %v1087 = vld [vmem:[#allocation4 + $0x158] sm:$0xff]
    %v1088 = vld [vmem:[#allocation4 + $0x160] sm:$0xff]
    %v1089 = vld [vmem:[#allocation4 + $0x168] sm:$0xff]
    %v1090 = vld [vmem:[#allocation4 + $0x170] sm:$0xff]
    %v1091 = vld [vmem:[#allocation4 + $0x178] sm:$0xff]
    %v1092 = vld [vmem:[#allocation4 + $0x180] sm:$0xff]
    %v1093 = vld [vmem:[#allocation4 + $0x188] sm:$0xff]
    %v1094 = vld [vmem:[#allocation4 + $0x190] sm:$0xff]
    %v1095 = vld [vmem:[#allocation4 + $0x198] sm:$0xff]
    %v1096 = vld [vmem:[#allocation4 + $0x1a0] sm:$0xff]
    %v1097 = vld [vmem:[#allocation4 + $0x1a8] sm:$0xff]
    %v1098 = vld [vmem:[#allocation4 + $0x1b0] sm:$0xff]
    %v1099 = vld [vmem:[#allocation4 + $0x1b8] sm:$0xff]
    %v1100 = vld [vmem:[#allocation4 + $0x1c0] sm:$0xff]
    %v1101 = vld [vmem:[#allocation4 + $0x1c8] sm:$0xff]
    %v1102 = vld [vmem:[#allocation4 + $0x1d0] sm:$0xff]
    %v1103 = vld [vmem:[#allocation4 + $0x1d8] sm:$0xff]
    %v1104 = vld [vmem:[#allocation4 + $0x1e0] sm:$0xff]
    %v1105 = vld [vmem:[#allocation4 + $0x1e8] sm:$0xff]
    %v1106 = vld [vmem:[#allocation4 + $0x1f0] sm:$0xff]
    %v1107 = vld [vmem:[#allocation4 + $0x1f8] sm:$0xff]
    %v1108 = vld [vmem:[#allocation4 + $0x200] sm:$0xff]
    %v1109 = vld [vmem:[#allocation4 + $0x208] sm:$0xff]
    %v1110 = vld [vmem:[#allocation4 + $0x210] sm:$0xff]
    %v1111 = vld [vmem:[#allocation4 + $0x218] sm:$0xff]
    %v1112 = vld [vmem:[#allocation4 + $0x220] sm:$0xff]
    %v1113 = vld [vmem:[#allocation4 + $0x228] sm:$0xff]
    %v1114 = vld [vmem:[#allocation4 + $0x230] sm:$0xff]
    %v1115 = vld [vmem:[#allocation4 + $0x238] sm:$0xff]
    %v1116 = vld [vmem:[#allocation4 + $0x240] sm:$0xff]
    %v1117 = vld [vmem:[#allocation4 + $0x248] sm:$0xff]
    %v1118 = vld [vmem:[#allocation4 + $0x250] sm:$0xff]
    %v1119 = vld [vmem:[#allocation4 + $0x258] sm:$0xff]
    %v1120 = vld [vmem:[#allocation4 + $0x260] sm:$0xff]
    %v1121 = vld [vmem:[#allocation4 + $0x268] sm:$0xff]
    %v1122 = vld [vmem:[#allocation4 + $0x270] sm:$0xff]
    %v1123 = vld [vmem:[#allocation4 + $0x278] sm:$0xff]
    %v1124 = vld [vmem:[#allocation4 + $0x280] sm:$0xff]
    %v1125 = vld [vmem:[#allocation4 + $0x288] sm:$0xff]
    %v1126 = vld [vmem:[#allocation4 + $0x290] sm:$0xff]
    %v1127 = vld [vmem:[#allocation4 + $0x298] sm:$0xff]
    %v1128 = vld [vmem:[#allocation4 + $0x2a0] sm:$0xff]
    %v1129 = vld [vmem:[#allocation4 + $0x2a8] sm:$0xff]
    %v1130 = vld [vmem:[#allocation4 + $0x2b0] sm:$0xff]
    %v1131 = vld [vmem:[#allocation4 + $0x2b8] sm:$0xff]
    %v1132 = vld [vmem:[#allocation4 + $0x2c0] sm:$0xff]
    %v1133 = vld [vmem:[#allocation4 + $0x2c8] sm:$0xff]
    %v1134 = vld [vmem:[#allocation4 + $0x2d0] sm:$0xff]
    %v1135 = vld [vmem:[#allocation4 + $0x2d8] sm:$0xff]
    %v1136 = vld [vmem:[#allocation4 + $0x2e0] sm:$0xff]
    %v1137 = vld [vmem:[#allocation4 + $0x2e8] sm:$0xff]
    %v1138 = vld [vmem:[#allocation4 + $0x2f0] sm:$0xff]
    %v1139 = vld [vmem:[#allocation4 + $0x2f8] sm:$0xff]
    %v1140 = vld [vmem:[#allocation4 + $0x300] sm:$0xff]
    %v1141 = vld [vmem:[#allocation4 + $0x308] sm:$0xff]
    %v1142 = vld [vmem:[#allocation4 + $0x310] sm:$0xff]
    %v1143 = vld [vmem:[#allocation4 + $0x318] sm:$0xff]
    %v1144 = vld [vmem:[#allocation4 + $0x320] sm:$0xff]
    %v1145 = vld [vmem:[#allocation4 + $0x328] sm:$0xff]
    %v1146 = vld [vmem:[#allocation4 + $0x330] sm:$0xff]
    %v1147 = vld [vmem:[#allocation4 + $0x338] sm:$0xff]
    %v1148 = vld [vmem:[#allocation4 + $0x340] sm:$0xff]
    %v1149 = vld [vmem:[#allocation4 + $0x348] sm:$0xff]
    %v1150 = vld [vmem:[#allocation4 + $0x350] sm:$0xff]
    %v1151 = vld [vmem:[#allocation4 + $0x358] sm:$0xff]
    %v1152 = vld [vmem:[#allocation4 + $0x360] sm:$0xff]
    %v1153 = vld [vmem:[#allocation4 + $0x368] sm:$0xff]
    %v1154 = vld [vmem:[#allocation4 + $0x370] sm:$0xff]
    %v1155 = vld [vmem:[#allocation4 + $0x378] sm:$0xff]
    %v1156 = vld [vmem:[#allocation4 + $0x380] sm:$0xff]
    %v1157 = vld [vmem:[#allocation4 + $0x388] sm:$0xff]
    %v1158 = vld [vmem:[#allocation4 + $0x390] sm:$0xff]
    %v1159 = vld [vmem:[#allocation4 + $0x398] sm:$0xff]
    %v1160 = vld [vmem:[#allocation4 + $0x3a0] sm:$0xff]
    %v1161 = vld [vmem:[#allocation4 + $0x3a8] sm:$0xff]
    %v1162 = vld [vmem:[#allocation4 + $0x3b0] sm:$0xff]
    %v1163 = vld [vmem:[#allocation4 + $0x3b8] sm:$0xff]
    %v1164 = vld [vmem:[#allocation4 + $0x3c0] sm:$0xff]
    %v1165 = vld [vmem:[#allocation4 + $0x3c8] sm:$0xff]
    %v1166 = vld [vmem:[#allocation4 + $0x3d0] sm:$0xff]
    %v1167 = vld [vmem:[#allocation4 + $0x3d8] sm:$0xff]
    %v1168 = vld [vmem:[#allocation4 + $0x3e0] sm:$0xff]
    %v1169 = vld [vmem:[#allocation4 + $0x3e8] sm:$0xff]
    %v1170 = vld [vmem:[#allocation4 + $0x3f0] sm:$0xff]
    %v1171 = vld [vmem:[#allocation4 + $0x3f8] sm:$0xff]
    %v1172 = vld [vmem:[%s4] sm:$0x3]
    %v1174 = vlaneseq
    %v1175 = vshrl.u32 %v1174, 7
    %v1176 = vsub.s32 0, %v1175
    %v1177 = vrot.slane %v1172, %v1176
    %v1178 = vlaneseq
    %v1179 = vshrl.u32 %v1178, 7
    %v1180 = vsub.s32 1, %v1179
    %v1181 = vrot.slane %v1172, %v1180
    %v1312 = vunpack.c.l.b16 %v1044
    %v1313 = vunpack.c.h.b16 %v1044
    %v1314 = vunpack.c.l.b16 %v1045
    %v1315 = vunpack.c.h.b16 %v1045
    %v1316 = vunpack.c.l.b16 %v1046
    %v1317 = vunpack.c.h.b16 %v1046
    %v1318 = vunpack.c.l.b16 %v1047
    %v1319 = vunpack.c.h.b16 %v1047
    %v1320 = vunpack.c.l.b16 %v1048
    %v1321 = vunpack.c.h.b16 %v1048
    %v1322 = vunpack.c.l.b16 %v1049
    %v1323 = vunpack.c.h.b16 %v1049
    %v1324 = vunpack.c.l.b16 %v1050
    %v1325 = vunpack.c.h.b16 %v1050
    %v1326 = vunpack.c.l.b16 %v1051
    %v1327 = vunpack.c.h.b16 %v1051
    %v1328 = vunpack.c.l.b16 %v1052
    %v1329 = vunpack.c.h.b16 %v1052
    %v1330 = vunpack.c.l.b16 %v1053
    %v1331 = vunpack.c.h.b16 %v1053
    %v1332 = vunpack.c.l.b16 %v1054
    %v1333 = vunpack.c.h.b16 %v1054
    %v1334 = vunpack.c.l.b16 %v1055
    %v1335 = vunpack.c.h.b16 %v1055
    %v1336 = vunpack.c.l.b16 %v1056
    %v1337 = vunpack.c.h.b16 %v1056
    %v1338 = vunpack.c.l.b16 %v1057
    %v1339 = vunpack.c.h.b16 %v1057
    %v1340 = vunpack.c.l.b16 %v1058
    %v1341 = vunpack.c.h.b16 %v1058
    %v1342 = vunpack.c.l.b16 %v1059
    %v1343 = vunpack.c.h.b16 %v1059
    %v1344 = vunpack.c.l.b16 %v1060
    %v1345 = vunpack.c.h.b16 %v1060
    %v1346 = vunpack.c.l.b16 %v1061
    %v1347 = vunpack.c.h.b16 %v1061
    %v1348 = vunpack.c.l.b16 %v1062
    %v1349 = vunpack.c.h.b16 %v1062
    %v1350 = vunpack.c.l.b16 %v1063
    %v1351 = vunpack.c.h.b16 %v1063
    %v1352 = vunpack.c.l.b16 %v1064
    %v1353 = vunpack.c.h.b16 %v1064
    %v1354 = vunpack.c.l.b16 %v1065
    %v1355 = vunpack.c.h.b16 %v1065
    %v1356 = vunpack.c.l.b16 %v1066
    %v1357 = vunpack.c.h.b16 %v1066
    %v1358 = vunpack.c.l.b16 %v1067
    %v1359 = vunpack.c.h.b16 %v1067
    %v1360 = vunpack.c.l.b16 %v1068
    %v1361 = vunpack.c.h.b16 %v1068
    %v1362 = vunpack.c.l.b16 %v1069
    %v1363 = vunpack.c.h.b16 %v1069
    %v1364 = vunpack.c.l.b16 %v1070
    %v1365 = vunpack.c.h.b16 %v1070
    %v1366 = vunpack.c.l.b16 %v1071
    %v1367 = vunpack.c.h.b16 %v1071
    %v1368 = vunpack.c.l.b16 %v1072
    %v1369 = vunpack.c.h.b16 %v1072
    %v1370 = vunpack.c.l.b16 %v1073
    %v1371 = vunpack.c.h.b16 %v1073
    %v1372 = vunpack.c.l.b16 %v1074
    %v1373 = vunpack.c.h.b16 %v1074
    %v1374 = vunpack.c.l.b16 %v1075
    %v1375 = vunpack.c.h.b16 %v1075
    %v1376 = vunpack.c.l.b16 %v1076
    %v1377 = vunpack.c.h.b16 %v1076
    %v1378 = vunpack.c.l.b16 %v1077
    %v1379 = vunpack.c.h.b16 %v1077
    %v1380 = vunpack.c.l.b16 %v1078
    %v1381 = vunpack.c.h.b16 %v1078
    %v1382 = vunpack.c.l.b16 %v1079
    %v1383 = vunpack.c.h.b16 %v1079
    %v1384 = vunpack.c.l.b16 %v1080
    %v1385 = vunpack.c.h.b16 %v1080
    %v1386 = vunpack.c.l.b16 %v1081
    %v1387 = vunpack.c.h.b16 %v1081
    %v1388 = vunpack.c.l.b16 %v1082
    %v1389 = vunpack.c.h.b16 %v1082
    %v1390 = vunpack.c.l.b16 %v1083
    %v1391 = vunpack.c.h.b16 %v1083
    %v1392 = vunpack.c.l.b16 %v1084
    %v1393 = vunpack.c.h.b16 %v1084
    %v1394 = vunpack.c.l.b16 %v1085
    %v1395 = vunpack.c.h.b16 %v1085
    %v1396 = vunpack.c.l.b16 %v1086
    %v1397 = vunpack.c.h.b16 %v1086
    %v1398 = vunpack.c.l.b16 %v1087
    %v1399 = vunpack.c.h.b16 %v1087
    %v1400 = vunpack.c.l.b16 %v1088
    %v1401 = vunpack.c.h.b16 %v1088
    %v1402 = vunpack.c.l.b16 %v1089
    %v1403 = vunpack.c.h.b16 %v1089
    %v1404 = vunpack.c.l.b16 %v1090
    %v1405 = vunpack.c.h.b16 %v1090
    %v1406 = vunpack.c.l.b16 %v1091
    %v1407 = vunpack.c.h.b16 %v1091
    %v1408 = vunpack.c.l.b16 %v1092
    %v1409 = vunpack.c.h.b16 %v1092
    %v1410 = vunpack.c.l.b16 %v1093
    %v1411 = vunpack.c.h.b16 %v1093
    %v1412 = vunpack.c.l.b16 %v1094
    %v1413 = vunpack.c.h.b16 %v1094
    %v1414 = vunpack.c.l.b16 %v1095
    %v1415 = vunpack.c.h.b16 %v1095
    %v1416 = vunpack.c.l.b16 %v1096
    %v1417 = vunpack.c.h.b16 %v1096
    %v1418 = vunpack.c.l.b16 %v1097
    %v1419 = vunpack.c.h.b16 %v1097
    %v1420 = vunpack.c.l.b16 %v1098
    %v1421 = vunpack.c.h.b16 %v1098
    %v1422 = vunpack.c.l.b16 %v1099
    %v1423 = vunpack.c.h.b16 %v1099
    %v1424 = vunpack.c.l.b16 %v1100
    %v1425 = vunpack.c.h.b16 %v1100
    %v1426 = vunpack.c.l.b16 %v1101
    %v1427 = vunpack.c.h.b16 %v1101
    %v1428 = vunpack.c.l.b16 %v1102
    %v1429 = vunpack.c.h.b16 %v1102
    %v1430 = vunpack.c.l.b16 %v1103
    %v1431 = vunpack.c.h.b16 %v1103
    %v1432 = vunpack.c.l.b16 %v1104
    %v1433 = vunpack.c.h.b16 %v1104
    %v1434 = vunpack.c.l.b16 %v1105
    %v1435 = vunpack.c.h.b16 %v1105
    %v1436 = vunpack.c.l.b16 %v1106
    %v1437 = vunpack.c.h.b16 %v1106
    %v1438 = vunpack.c.l.b16 %v1107
    %v1439 = vunpack.c.h.b16 %v1107
    %v1440 = vunpack.c.l.b16 %v1108
    %v1441 = vunpack.c.h.b16 %v1108
    %v1442 = vunpack.c.l.b16 %v1109
    %v1443 = vunpack.c.h.b16 %v1109
    %v1444 = vunpack.c.l.b16 %v1110
    %v1445 = vunpack.c.h.b16 %v1110
    %v1446 = vunpack.c.l.b16 %v1111
    %v1447 = vunpack.c.h.b16 %v1111
    %v1448 = vunpack.c.l.b16 %v1112
    %v1449 = vunpack.c.h.b16 %v1112
    %v1450 = vunpack.c.l.b16 %v1113
    %v1451 = vunpack.c.h.b16 %v1113
    %v1452 = vunpack.c.l.b16 %v1114
    %v1453 = vunpack.c.h.b16 %v1114
    %v1454 = vunpack.c.l.b16 %v1115
    %v1455 = vunpack.c.h.b16 %v1115
    %v1456 = vunpack.c.l.b16 %v1116
    %v1457 = vunpack.c.h.b16 %v1116
    %v1458 = vunpack.c.l.b16 %v1117
    %v1459 = vunpack.c.h.b16 %v1117
    %v1460 = vunpack.c.l.b16 %v1118
    %v1461 = vunpack.c.h.b16 %v1118
    %v1462 = vunpack.c.l.b16 %v1119
    %v1463 = vunpack.c.h.b16 %v1119
    %v1464 = vunpack.c.l.b16 %v1120
    %v1465 = vunpack.c.h.b16 %v1120
    %v1466 = vunpack.c.l.b16 %v1121
    %v1467 = vunpack.c.h.b16 %v1121
    %v1468 = vunpack.c.l.b16 %v1122
    %v1469 = vunpack.c.h.b16 %v1122
    %v1470 = vunpack.c.l.b16 %v1123
    %v1471 = vunpack.c.h.b16 %v1123
    %v1472 = vunpack.c.l.b16 %v1124
    %v1473 = vunpack.c.h.b16 %v1124
    %v1474 = vunpack.c.l.b16 %v1125
    %v1475 = vunpack.c.h.b16 %v1125
    %v1476 = vunpack.c.l.b16 %v1126
    %v1477 = vunpack.c.h.b16 %v1126
    %v1478 = vunpack.c.l.b16 %v1127
    %v1479 = vunpack.c.h.b16 %v1127
    %v1480 = vunpack.c.l.b16 %v1128
    %v1481 = vunpack.c.h.b16 %v1128
    %v1482 = vunpack.c.l.b16 %v1129
    %v1483 = vunpack.c.h.b16 %v1129
    %v1484 = vunpack.c.l.b16 %v1130
    %v1485 = vunpack.c.h.b16 %v1130
    %v1486 = vunpack.c.l.b16 %v1131
    %v1487 = vunpack.c.h.b16 %v1131
    %v1488 = vunpack.c.l.b16 %v1132
    %v1489 = vunpack.c.h.b16 %v1132
    %v1490 = vunpack.c.l.b16 %v1133
    %v1491 = vunpack.c.h.b16 %v1133
    %v1492 = vunpack.c.l.b16 %v1134
    %v1493 = vunpack.c.h.b16 %v1134
    %v1494 = vunpack.c.l.b16 %v1135
    %v1495 = vunpack.c.h.b16 %v1135
    %v1496 = vunpack.c.l.b16 %v1136
    %v1497 = vunpack.c.h.b16 %v1136
    %v1498 = vunpack.c.l.b16 %v1137
    %v1499 = vunpack.c.h.b16 %v1137
    %v1500 = vunpack.c.l.b16 %v1138
    %v1501 = vunpack.c.h.b16 %v1138
    %v1502 = vunpack.c.l.b16 %v1139
    %v1503 = vunpack.c.h.b16 %v1139
    %v1504 = vunpack.c.l.b16 %v1140
    %v1505 = vunpack.c.h.b16 %v1140
    %v1506 = vunpack.c.l.b16 %v1141
    %v1507 = vunpack.c.h.b16 %v1141
    %v1508 = vunpack.c.l.b16 %v1142
    %v1509 = vunpack.c.h.b16 %v1142
    %v1510 = vunpack.c.l.b16 %v1143
    %v1511 = vunpack.c.h.b16 %v1143
    %v1512 = vunpack.c.l.b16 %v1144
    %v1513 = vunpack.c.h.b16 %v1144
    %v1514 = vunpack.c.l.b16 %v1145
    %v1515 = vunpack.c.h.b16 %v1145
    %v1516 = vunpack.c.l.b16 %v1146
    %v1517 = vunpack.c.h.b16 %v1146
    %v1518 = vunpack.c.l.b16 %v1147
    %v1519 = vunpack.c.h.b16 %v1147
    %v1520 = vunpack.c.l.b16 %v1148
    %v1521 = vunpack.c.h.b16 %v1148
    %v1522 = vunpack.c.l.b16 %v1149
    %v1523 = vunpack.c.h.b16 %v1149
    %v1524 = vunpack.c.l.b16 %v1150
    %v1525 = vunpack.c.h.b16 %v1150
    %v1526 = vunpack.c.l.b16 %v1151
    %v1527 = vunpack.c.h.b16 %v1151
    %v1528 = vunpack.c.l.b16 %v1152
    %v1529 = vunpack.c.h.b16 %v1152
    %v1530 = vunpack.c.l.b16 %v1153
    %v1531 = vunpack.c.h.b16 %v1153
    %v1532 = vunpack.c.l.b16 %v1154
    %v1533 = vunpack.c.h.b16 %v1154
    %v1534 = vunpack.c.l.b16 %v1155
    %v1535 = vunpack.c.h.b16 %v1155
    %v1536 = vunpack.c.l.b16 %v1156
    %v1537 = vunpack.c.h.b16 %v1156
    %v1538 = vunpack.c.l.b16 %v1157
    %v1539 = vunpack.c.h.b16 %v1157
    %v1540 = vunpack.c.l.b16 %v1158
    %v1541 = vunpack.c.h.b16 %v1158
    %v1542 = vunpack.c.l.b16 %v1159
    %v1543 = vunpack.c.h.b16 %v1159
    %v1544 = vunpack.c.l.b16 %v1160
    %v1545 = vunpack.c.h.b16 %v1160
    %v1546 = vunpack.c.l.b16 %v1161
    %v1547 = vunpack.c.h.b16 %v1161
    %v1548 = vunpack.c.l.b16 %v1162
    %v1549 = vunpack.c.h.b16 %v1162
    %v1550 = vunpack.c.l.b16 %v1163
    %v1551 = vunpack.c.h.b16 %v1163
    %v1552 = vunpack.c.l.b16 %v1164
    %v1553 = vunpack.c.h.b16 %v1164
    %v1554 = vunpack.c.l.b16 %v1165
    %v1555 = vunpack.c.h.b16 %v1165
    %v1556 = vunpack.c.l.b16 %v1166
    %v1557 = vunpack.c.h.b16 %v1166
    %v1558 = vunpack.c.l.b16 %v1167
    %v1559 = vunpack.c.h.b16 %v1167
    %v1560 = vunpack.c.l.b16 %v1168
    %v1561 = vunpack.c.h.b16 %v1168
    %v1562 = vunpack.c.l.b16 %v1169
    %v1563 = vunpack.c.h.b16 %v1169
    %v1564 = vunpack.c.l.b16 %v1170
    %v1565 = vunpack.c.h.b16 %v1170
    %v1566 = vunpack.c.l.b16 %v1171
    %v1567 = vunpack.c.h.b16 %v1171
    %v1568 = vpack.c.b16 %v1314, %v1312
    %v1569 = vpack.c.b16 %v1315, %v1313
    %v1570 = vpack.c.b16 %v1318, %v1316
    %v1571 = vpack.c.b16 %v1319, %v1317
    %v1572 = vpack.c.b16 %v1322, %v1320
    %v1573 = vpack.c.b16 %v1323, %v1321
    %v1574 = vpack.c.b16 %v1326, %v1324
    %v1575 = vpack.c.b16 %v1327, %v1325
    %v1576 = vpack.c.b16 %v1330, %v1328
    %v1577 = vpack.c.b16 %v1331, %v1329
    %v1578 = vpack.c.b16 %v1334, %v1332
    %v1579 = vpack.c.b16 %v1335, %v1333
    %v1580 = vpack.c.b16 %v1338, %v1336
    %v1581 = vpack.c.b16 %v1339, %v1337
    %v1582 = vpack.c.b16 %v1342, %v1340
    %v1583 = vpack.c.b16 %v1343, %v1341
    %v1584 = vpack.c.b16 %v1346, %v1344
    %v1585 = vpack.c.b16 %v1347, %v1345
    %v1586 = vpack.c.b16 %v1350, %v1348
    %v1587 = vpack.c.b16 %v1351, %v1349
    %v1588 = vpack.c.b16 %v1354, %v1352
    %v1589 = vpack.c.b16 %v1355, %v1353
    %v1590 = vpack.c.b16 %v1358, %v1356
    %v1591 = vpack.c.b16 %v1359, %v1357
    %v1592 = vpack.c.b16 %v1362, %v1360
    %v1593 = vpack.c.b16 %v1363, %v1361
    %v1594 = vpack.c.b16 %v1366, %v1364
    %v1595 = vpack.c.b16 %v1367, %v1365
    %v1596 = vpack.c.b16 %v1370, %v1368
    %v1597 = vpack.c.b16 %v1371, %v1369
    %v1598 = vpack.c.b16 %v1374, %v1372
    %v1599 = vpack.c.b16 %v1375, %v1373
    %v1600 = vpack.c.b16 %v1378, %v1376
    %v1601 = vpack.c.b16 %v1379, %v1377
    %v1602 = vpack.c.b16 %v1382, %v1380
    %v1603 = vpack.c.b16 %v1383, %v1381
    %v1604 = vpack.c.b16 %v1386, %v1384
    %v1605 = vpack.c.b16 %v1387, %v1385
    %v1606 = vpack.c.b16 %v1390, %v1388
    %v1607 = vpack.c.b16 %v1391, %v1389
    %v1608 = vpack.c.b16 %v1394, %v1392
    %v1609 = vpack.c.b16 %v1395, %v1393
    %v1610 = vpack.c.b16 %v1398, %v1396
    %v1611 = vpack.c.b16 %v1399, %v1397
    %v1612 = vpack.c.b16 %v1402, %v1400
    %v1613 = vpack.c.b16 %v1403, %v1401
    %v1614 = vpack.c.b16 %v1406, %v1404
    %v1615 = vpack.c.b16 %v1407, %v1405
    %v1616 = vpack.c.b16 %v1410, %v1408
    %v1617 = vpack.c.b16 %v1411, %v1409
    %v1618 = vpack.c.b16 %v1414, %v1412
    %v1619 = vpack.c.b16 %v1415, %v1413
    %v1620 = vpack.c.b16 %v1418, %v1416
    %v1621 = vpack.c.b16 %v1419, %v1417
    %v1622 = vpack.c.b16 %v1422, %v1420
    %v1623 = vpack.c.b16 %v1423, %v1421
    %v1624 = vpack.c.b16 %v1426, %v1424
    %v1625 = vpack.c.b16 %v1427, %v1425
    %v1626 = vpack.c.b16 %v1430, %v1428
    %v1627 = vpack.c.b16 %v1431, %v1429
    %v1628 = vpack.c.b16 %v1434, %v1432
    %v1629 = vpack.c.b16 %v1435, %v1433
    %v1630 = vpack.c.b16 %v1438, %v1436
    %v1631 = vpack.c.b16 %v1439, %v1437
    %v1632 = vpack.c.b16 %v1442, %v1440
    %v1633 = vpack.c.b16 %v1443, %v1441
    %v1634 = vpack.c.b16 %v1446, %v1444
    %v1635 = vpack.c.b16 %v1447, %v1445
    %v1636 = vpack.c.b16 %v1450, %v1448
    %v1637 = vpack.c.b16 %v1451, %v1449
    %v1638 = vpack.c.b16 %v1454, %v1452
    %v1639 = vpack.c.b16 %v1455, %v1453
    %v1640 = vpack.c.b16 %v1458, %v1456
    %v1641 = vpack.c.b16 %v1459, %v1457
    %v1642 = vpack.c.b16 %v1462, %v1460
    %v1643 = vpack.c.b16 %v1463, %v1461
    %v1644 = vpack.c.b16 %v1466, %v1464
    %v1645 = vpack.c.b16 %v1467, %v1465
    %v1646 = vpack.c.b16 %v1470, %v1468
    %v1647 = vpack.c.b16 %v1471, %v1469
    %v1648 = vpack.c.b16 %v1474, %v1472
    %v1649 = vpack.c.b16 %v1475, %v1473
    %v1650 = vpack.c.b16 %v1478, %v1476
    %v1651 = vpack.c.b16 %v1479, %v1477
    %v1652 = vpack.c.b16 %v1482, %v1480
    %v1653 = vpack.c.b16 %v1483, %v1481
    %v1654 = vpack.c.b16 %v1486, %v1484
    %v1655 = vpack.c.b16 %v1487, %v1485
    %v1656 = vpack.c.b16 %v1490, %v1488
    %v1657 = vpack.c.b16 %v1491, %v1489
    %v1658 = vpack.c.b16 %v1494, %v1492
    %v1659 = vpack.c.b16 %v1495, %v1493
    %v1660 = vpack.c.b16 %v1498, %v1496
    %v1661 = vpack.c.b16 %v1499, %v1497
    %v1662 = vpack.c.b16 %v1502, %v1500
    %v1663 = vpack.c.b16 %v1503, %v1501
    %v1664 = vpack.c.b16 %v1506, %v1504
    %v1665 = vpack.c.b16 %v1507, %v1505
    %v1666 = vpack.c.b16 %v1510, %v1508
    %v1667 = vpack.c.b16 %v1511, %v1509
    %v1668 = vpack.c.b16 %v1514, %v1512
    %v1669 = vpack.c.b16 %v1515, %v1513
    %v1670 = vpack.c.b16 %v1518, %v1516
    %v1671 = vpack.c.b16 %v1519, %v1517
    %v1672 = vpack.c.b16 %v1522, %v1520
    %v1673 = vpack.c.b16 %v1523, %v1521
    %v1674 = vpack.c.b16 %v1526, %v1524
    %v1675 = vpack.c.b16 %v1527, %v1525
    %v1676 = vpack.c.b16 %v1530, %v1528
    %v1677 = vpack.c.b16 %v1531, %v1529
    %v1678 = vpack.c.b16 %v1534, %v1532
    %v1679 = vpack.c.b16 %v1535, %v1533
    %v1680 = vpack.c.b16 %v1538, %v1536
    %v1681 = vpack.c.b16 %v1539, %v1537
    %v1682 = vpack.c.b16 %v1542, %v1540
    %v1683 = vpack.c.b16 %v1543, %v1541
    %v1684 = vpack.c.b16 %v1546, %v1544
    %v1685 = vpack.c.b16 %v1547, %v1545
    %v1686 = vpack.c.b16 %v1550, %v1548
    %v1687 = vpack.c.b16 %v1551, %v1549
    %v1688 = vpack.c.b16 %v1554, %v1552
    %v1689 = vpack.c.b16 %v1555, %v1553
    %v1690 = vpack.c.b16 %v1558, %v1556
    %v1691 = vpack.c.b16 %v1559, %v1557
    %v1692 = vpack.c.b16 %v1562, %v1560
    %v1693 = vpack.c.b16 %v1563, %v1561
    %v1694 = vpack.c.b16 %v1566, %v1564
    %v1695 = vpack.c.b16 %v1567, %v1565
    %1824 = vmatprep.subr.bf16.mxu0 %v1583
    %1825 = vmatpush1.bf16.msra.mxu0 %v1582
    %1826 = vmatprep.subr.bf16.mxu0 %v1581
    %1827 = vmatpush1.bf16.msra.mxu0 %v1580
    %1828 = vmatprep.subr.bf16.mxu0 %v1579
    %1829 = vmatpush1.bf16.msra.mxu0 %v1578
    %1830 = vmatprep.subr.bf16.mxu0 %v1577
    %1831 = vmatpush1.bf16.msra.mxu0 %v1576
    %1832 = vmatprep.subr.bf16.mxu0 %v1575
    %1833 = vmatpush1.bf16.msra.mxu0 %v1574
    %1834 = vmatprep.subr.bf16.mxu0 %v1573
    %1835 = vmatpush1.bf16.msra.mxu0 %v1572
    %1836 = vmatprep.subr.bf16.mxu0 %v1571
    %1837 = vmatpush1.bf16.msra.mxu0 %v1570
    %1838 = vmatprep.subr.bf16.mxu0 %v1569
    %1839 = vmatpush1.bf16.msra.mxu0 %v1568
    %1840 = vmatprep.subr.bf16.mxu0 %v1599
    %1841 = vmatpush2.bf16.msra.mxu0 %v1598
    %1842 = vmatprep.subr.bf16.mxu0 %v1597
    %1843 = vmatpush2.bf16.msra.mxu0 %v1596
    %1844 = vmatprep.subr.bf16.mxu0 %v1595
    %1845 = vmatpush2.bf16.msra.mxu0 %v1594
    %1846 = vmatprep.subr.bf16.mxu0 %v1593
    %1847 = vmatpush2.bf16.msra.mxu0 %v1592
    %1848 = vmatprep.subr.bf16.mxu0 %v1591
    %1849 = vmatpush2.bf16.msra.mxu0 %v1590
    %1850 = vmatprep.subr.bf16.mxu0 %v1589
    %1851 = vmatpush2.bf16.msra.mxu0 %v1588
    %1852 = vmatprep.subr.bf16.mxu0 %v1587
    %1853 = vmatpush2.bf16.msra.mxu0 %v1586
    %1854 = vmatprep.subr.bf16.mxu0 %v1585
    %1855 = vmatpush2.bf16.msra.mxu0 %v1584
    %1856 = vmatprep.mubr.bf16.mxu0 %v1037
    %1857 = vmatmul.mubr.bf16.gmra.mxu0 %v1036
    %v1858 = vpop.f32.mrf.mxu0
    %v1859 = vadd.f32 %v1177, %v1858
    %v1860 = vpop.f32.mrf.mxu0
    %v1861 = vadd.f32 %v1181, %v1860
    %v1862 = vpop.f32.mrf.mxu0
    %v1863 = vpop.f32.mrf.mxu0
    %1864 = vdwg.mxu0
    %1865 = vmatprep.subr.bf16.mxu0 %v1615
    %1866 = vmatpush1.bf16.msra.mxu0 %v1614
    %1867 = vmatprep.subr.bf16.mxu0 %v1613
    %1868 = vmatpush1.bf16.msra.mxu0 %v1612
    %1869 = vmatprep.subr.bf16.mxu0 %v1611
    %1870 = vmatpush1.bf16.msra.mxu0 %v1610
    %1871 = vmatprep.subr.bf16.mxu0 %v1609
    %1872 = vmatpush1.bf16.msra.mxu0 %v1608
    %1873 = vmatprep.subr.bf16.mxu0 %v1607
    %1874 = vmatpush1.bf16.msra.mxu0 %v1606
    %1875 = vmatprep.subr.bf16.mxu0 %v1605
    %1876 = vmatpush1.bf16.msra.mxu0 %v1604
    %1877 = vmatprep.subr.bf16.mxu0 %v1603
    %1878 = vmatpush1.bf16.msra.mxu0 %v1602
    %1879 = vmatprep.subr.bf16.mxu0 %v1601
    %1880 = vmatpush1.bf16.msra.mxu0 %v1600
    %1881 = vmatprep.subr.bf16.mxu0 %v1631
    %1882 = vmatpush2.bf16.msra.mxu0 %v1630
    %1883 = vmatprep.subr.bf16.mxu0 %v1629
    %1884 = vmatpush2.bf16.msra.mxu0 %v1628
    %1885 = vmatprep.subr.bf16.mxu0 %v1627
    %1886 = vmatpush2.bf16.msra.mxu0 %v1626
    %1887 = vmatprep.subr.bf16.mxu0 %v1625
    %1888 = vmatpush2.bf16.msra.mxu0 %v1624
    %1889 = vmatprep.subr.bf16.mxu0 %v1623
    %1890 = vmatpush2.bf16.msra.mxu0 %v1622
    %1891 = vmatprep.subr.bf16.mxu0 %v1621
    %1892 = vmatpush2.bf16.msra.mxu0 %v1620
    %1893 = vmatprep.subr.bf16.mxu0 %v1619
    %1894 = vmatpush2.bf16.msra.mxu0 %v1618
    %1895 = vmatprep.subr.bf16.mxu0 %v1617
    %1896 = vmatpush2.bf16.msra.mxu0 %v1616
    %1897 = vmatprep.mubr.bf16.mxu0 %v1039
    %1898 = vmatmul.mubr.bf16.gmra.mxu0 %v1038
    %v1899 = vpop.f32.mrf.mxu0
    %v1900 = vadd.f32 %v1859, %v1899
    %v1901 = vpop.f32.mrf.mxu0
    %v1902 = vadd.f32 %v1861, %v1901
    %v1903 = vpop.f32.mrf.mxu0
    %v1904 = vpop.f32.mrf.mxu0
    %1905 = vdwg.mxu0
    %1906 = vmatprep.subr.bf16.mxu0 %v1647
    %1907 = vmatpush1.bf16.msra.mxu0 %v1646
    %1908 = vmatprep.subr.bf16.mxu0 %v1645
    %1909 = vmatpush1.bf16.msra.mxu0 %v1644
    %1910 = vmatprep.subr.bf16.mxu0 %v1643
    %1911 = vmatpush1.bf16.msra.mxu0 %v1642
    %1912 = vmatprep.subr.bf16.mxu0 %v1641
    %1913 = vmatpush1.bf16.msra.mxu0 %v1640
    %1914 = vmatprep.subr.bf16.mxu0 %v1639
    %1915 = vmatpush1.bf16.msra.mxu0 %v1638
    %1916 = vmatprep.subr.bf16.mxu0 %v1637
    %1917 = vmatpush1.bf16.msra.mxu0 %v1636
    %1918 = vmatprep.subr.bf16.mxu0 %v1635
    %1919 = vmatpush1.bf16.msra.mxu0 %v1634
    %1920 = vmatprep.subr.bf16.mxu0 %v1633
    %1921 = vmatpush1.bf16.msra.mxu0 %v1632
    %1922 = vmatprep.subr.bf16.mxu0 %v1663
    %1923 = vmatpush2.bf16.msra.mxu0 %v1662
    %1924 = vmatprep.subr.bf16.mxu0 %v1661
    %1925 = vmatpush2.bf16.msra.mxu0 %v1660
    %1926 = vmatprep.subr.bf16.mxu0 %v1659
    %1927 = vmatpush2.bf16.msra.mxu0 %v1658
    %1928 = vmatprep.subr.bf16.mxu0 %v1657
    %1929 = vmatpush2.bf16.msra.mxu0 %v1656
    %1930 = vmatprep.subr.bf16.mxu0 %v1655
    %1931 = vmatpush2.bf16.msra.mxu0 %v1654
    %1932 = vmatprep.subr.bf16.mxu0 %v1653
    %1933 = vmatpush2.bf16.msra.mxu0 %v1652
    %1934 = vmatprep.subr.bf16.mxu0 %v1651
    %1935 = vmatpush2.bf16.msra.mxu0 %v1650
    %1936 = vmatprep.subr.bf16.mxu0 %v1649
    %1937 = vmatpush2.bf16.msra.mxu0 %v1648
    %1938 = vmatprep.mubr.bf16.mxu0 %v1041
    %1939 = vmatmul.mubr.bf16.gmra.mxu0 %v1040
    %v1940 = vpop.f32.mrf.mxu0
    %v1941 = vadd.f32 %v1900, %v1940
    %v1942 = vpop.f32.mrf.mxu0
    %v1943 = vadd.f32 %v1902, %v1942
    %v1944 = vpop.f32.mrf.mxu0
    %v1945 = vpop.f32.mrf.mxu0
    %1946 = vdwg.mxu0
    %1947 = vmatprep.subr.bf16.mxu0 %v1679
    %1948 = vmatpush1.bf16.msra.mxu0 %v1678
    %1949 = vmatprep.subr.bf16.mxu0 %v1677
    %1950 = vmatpush1.bf16.msra.mxu0 %v1676
    %1951 = vmatprep.subr.bf16.mxu0 %v1675
    %1952 = vmatpush1.bf16.msra.mxu0 %v1674
    %1953 = vmatprep.subr.bf16.mxu0 %v1673
    %1954 = vmatpush1.bf16.msra.mxu0 %v1672
    %1955 = vmatprep.subr.bf16.mxu0 %v1671
    %1956 = vmatpush1.bf16.msra.mxu0 %v1670
    %1957 = vmatprep.subr.bf16.mxu0 %v1669
    %1958 = vmatpush1.bf16.msra.mxu0 %v1668
    %1959 = vmatprep.subr.bf16.mxu0 %v1667
    %1960 = vmatpush1.bf16.msra.mxu0 %v1666
    %1961 = vmatprep.subr.bf16.mxu0 %v1665
    %1962 = vmatpush1.bf16.msra.mxu0 %v1664
    %1963 = vmatprep.subr.bf16.mxu0 %v1695
    %1964 = vmatpush2.bf16.msra.mxu0 %v1694
    %1965 = vmatprep.subr.bf16.mxu0 %v1693
    %1966 = vmatpush2.bf16.msra.mxu0 %v1692
    %1967 = vmatprep.subr.bf16.mxu0 %v1691
    %1968 = vmatpush2.bf16.msra.mxu0 %v1690
    %1969 = vmatprep.subr.bf16.mxu0 %v1689
    %1970 = vmatpush2.bf16.msra.mxu0 %v1688
    %1971 = vmatprep.subr.bf16.mxu0 %v1687
    %1972 = vmatpush2.bf16.msra.mxu0 %v1686
    %1973 = vmatprep.subr.bf16.mxu0 %v1685
    %1974 = vmatpush2.bf16.msra.mxu0 %v1684
    %1975 = vmatprep.subr.bf16.mxu0 %v1683
    %1976 = vmatpush2.bf16.msra.mxu0 %v1682
    %1977 = vmatprep.subr.bf16.mxu0 %v1681
    %1978 = vmatpush2.bf16.msra.mxu0 %v1680
    %1979 = vmatprep.mubr.bf16.mxu0 %v1043
    %1980 = vmatmul.mubr.bf16.gmra.mxu0 %v1042
    %v1981 = vpop.f32.mrf.mxu0
    %v1982 = vadd.f32 %v1941, %v1981
    %v1983 = vpop.f32.mrf.mxu0
    %v1984 = vadd.f32 %v1943, %v1983
    %v1985 = vpop.f32.mrf.mxu0
    %v1986 = vpop.f32.mrf.mxu0
    %1987 = vdwg.mxu0
    %v1990 = vcombine.low %v1982, %v1984
    %v1992 = vunpack.c.l.s4 1983009808
    %v1993 = vunpack.c.0.s8 %v1992
    %v1994 = vlaneseq
    %v1995 = vshrl.u32 %v1994, 7
    %v1996 = vsub.s32 %v1993, %v1995
    %v1997 = vrot.slane %v1990, %v1996
    %1999 = vst [vmem:[%s5] sm:$0xf] %v1997
    // Predicated region
    $region30: #{simple_alignment_forward.1} parent=1 // pred_check
      _
    $region31: #{simple_alignment_forward.1} parent=1 // pred_check_branch
      %2001 = sbr.rel (0) target = $region33
    $region32: #{simple_alignment_forward.1} parent=1 // pred_region
      _
    $region33: #{simple_alignment_forward.1} parent=1 // pred_fallthru
      _
    // Predicated region
    $region34: #{simple_alignment_forward.1} parent=1 // pred_check
      _
    $region35: #{simple_alignment_forward.1} parent=1 // pred_check_branch
      %2003 = sbr.rel (0) target = $region37
    $region36: #{simple_alignment_forward.1} parent=1 // pred_region
      _
    $region37: #{simple_alignment_forward.1} parent=1 // pred_fallthru
      _
    %2004 = vsyncpa [#allocation3], 1
    %2005 = vsyncpa [#allocation5], 1

</llo_original>
